<compile_context>
chip_gen: v7x
topology: tpu7x:2x2x1
jax: 0.10.0
libtpu: 0.0.40
codegen_flags: <defaults>
</compile_context>

<pallas_src>
import functools

import numpy as np

import jax
import jax.numpy as jnp
from jax import lax
from jax.experimental import pallas as pl
from jax.experimental.pallas import tpu as pltpu

EPSILON = 1e-4          # self.epsilon
NUM_ITER_MAX = 100      # numItermax in sink()
STOP_THR = 1e-3         # stopThr in sink()
K_INNER = 10            # iterations between global (scalar) exit checks
assert NUM_ITER_MAX % K_INNER == 0  # keeps the hard 100-iteration cap exact


def _sinkhorn_kernel(s_ref, o_ref, *, H, W, train_stage):
    """Sinkhorn-normalize a lane-packed batch of (H, W) matrices.

    s_ref / o_ref: (H, W, TB) -- rows on the leading axis, cols on sublanes,
    batch on lanes.
    """
    K = s_ref[...].astype(jnp.float32) + EPSILON             # s += epsilon
    TB = K.shape[-1]

    row_idx = lax.broadcasted_iota(jnp.int32, (H, 1, TB), 0)
    col_idx = lax.broadcasted_iota(jnp.int32, (1, W, TB), 1)

    # a = ones(H); a[-1] = W - 1   (only 1/a is needed, and it is applied to
    # the reduced (H,1,TB) vector, NOT to the full matrix -> no Kp buffer).
    inv_a = jnp.where(row_idx == H - 1, 1.0 / float(W - 1), 1.0).astype(jnp.float32)
    # b = ones(W); b[-1] = H - 1
    b_vec = jnp.where(col_idx == W - 1, float(H - 1), 1.0).astype(jnp.float32)

    u0 = jnp.ones((H, 1, TB), jnp.float32)
    v0 = jnp.ones((1, W, TB), jnp.float32)
    done0 = jnp.zeros((1, 1, TB), jnp.float32)                # per-lane converged flag

    def one_iter(_, carry):
        done, u, v = carry
        # K^T @ u -> (1, W, TB): reduction over the leading (row) axis,
        # i.e. plain adds across vregs (no MXU: per-element K, tiny sizes).
        # TODO(synk): if MLIR shows a materialized (H,W,TB) product temporary
        # here, rewrite both reductions as chunked fori_loop accumulations.
        ktu = jnp.sum(K * u, axis=0, keepdims=True)
        v_new = b_vec / ktu
        # Kp @ v == inv_a * (K @ v): reduce over sublanes, then scale (H,1,TB).
        kv = jnp.sum(K * v_new, axis=1, keepdims=True)
        u_new = 1.0 / (inv_a * kv)
        # Per-element residual:  ||du||_1^2 + ||dv||_1^2   -> (1, 1, TB)
        u_res = jnp.sum(jnp.abs(u - u_new), axis=0, keepdims=True) ** 2
        v_res = jnp.sum(jnp.abs(v - v_new), axis=1, keepdims=True) ** 2
        err = u_res + v_res
        # Freeze already-converged lanes so each batch element stops at
        # exactly the same iteration as the serial reference.
        active = done < 0.5
        u = jnp.where(active, u_new, u)
        v = jnp.where(active, v_new, v)
        done = jnp.maximum(done, (err <= STOP_THR).astype(jnp.float32))
        # NOTE: divides stay exact (no pl.reciprocal(approx=True)) on purpose:
        # an approximate reciprocal perturbs the stopping criterion away from
        # the reference. The reference's every-10-iteration diagnostic `err`
        # never influences the loop or output, so it is omitted.
        return done, u, v

    def cond_fn(carry):
        cpt, min_done, _, _, _ = carry
        return jnp.logical_and(cpt < NUM_ITER_MAX, min_done < 0.5)

    def body_fn(carry):
        cpt, _, done, u, v = carry
        # Run K_INNER iterations back-to-back (unrolled: LLO gets cross-iter
        # visibility); only then pay the cross-lane min + vector->scalar sync
        # + scalar branch of the global exit check.
        done, u, v = lax.fori_loop(0, K_INNER, one_iter, (done, u, v),
                                   unroll=True)
        return cpt + K_INNER, jnp.min(done), done, u, v

    _, _, _, u, v = lax.while_loop(
        cond_fn, body_fn, (jnp.int32(0), jnp.float32(0.0), done0, u0, v0))

    s_tem = u * K * v                                         # (H, W, TB)

    if train_stage:
        # s_tem[-1][-1] = 0
        corner = jnp.logical_and(row_idx == H - 1, col_idx == W - 1)
        s_tem = jnp.where(corner, 0.0, s_tem)

    # Full lane-dense store; any [:H-1, :W-1] slicing is done in the wrapper.
    o_ref[...] = s_tem


def _pick_tb_and_vmem(H, W, in_itemsize):
    """Pick the batch-lane tile and a VMEM budget for the current chip."""
    try:
        info = pltpu.get_tpu_info()
        vmem_cap = int(getattr(info, "vmem_capacity_bytes", 64 << 20))
    except Exception:  # pragma: no cover - conservative fallback (v7x-sized)
        vmem_cap = 64 << 20
    budget = int(vmem_cap * 0.80)                  # headroom for compiler scratch

    def working_set(tb):
        hw = H * W * tb
        # K resident (f32) + one reduce/product temp (f32)
        # + input double buffer + output double buffer (f32); u/v/done are tiny.
        return hw * (4 + 4 + 2 * in_itemsize + 2 * 4)

    tb = 128                                       # lane-dense, unmasked stores
    while tb > 8 and working_set(tb) > budget:
        tb //= 2                                   # only for very large H*W
    vmem_limit = int(min(vmem_cap, max(working_set(tb) + (8 << 20), 32 << 20)))
    return tb, vmem_limit


def sinkhorn_forward(s, *, train_stage=True, last_layer=False):
    """Pallas implementation of Sinkhorn.forward (full-size nrows/ncols).

    TODO(synk): per-batch ragged nrows/ncols (and the dummy_row padding path)
    require data-dependent sub-matrix shapes; only the full-matrix case
    (nrows[b] = H-1, ncols[b] = W-1) is implemented.
    """
    B, H, W = s.shape
    assert H >= 2 and W >= 2, "Sinkhorn needs H, W >= 2 (a[-1]=W-1, b[-1]=H-1)"

    # Lane-pack the batch: (B, H, W) -> (H, W, B). Kernel casts to f32 in-VMEM,
    # so no wrapper-side astype (avoids an extra HBM pass for non-f32 inputs).
    # TODO(synk): if this layer is chained, keep activations in (H, W, B)
    # layout between layers to drop both wrapper transposes.
    s_t = jnp.transpose(s, (1, 2, 0))

    TB, vmem_limit = _pick_tb_and_vmem(H, W, jnp.dtype(s.dtype).itemsize)
    B_pad = pl.cdiv(B, TB) * TB
    if B_pad != B:
        # Pad with ones: K = 1 + eps stays strictly positive, so the extra
        # (discarded) lanes iterate safely; results are sliced off below.
        s_t = jnp.pad(s_t, ((0, 0), (0, 0), (0, B_pad - B)),
                      constant_values=1.0)

    kernel = functools.partial(_sinkhorn_kernel, H=H, W=W,
                               train_stage=train_stage)

    out_t = pl.pallas_call(
        kernel,
        out_shape=jax.ShapeDtypeStruct((H, W, B_pad), jnp.float32),
        grid=(B_pad // TB,),
        in_specs=[pl.BlockSpec((H, W, TB), lambda i: (0, 0, i))],
        out_specs=pl.BlockSpec((H, W, TB), lambda i: (0, 0, i)),
        compiler_params=pltpu.CompilerParams(
            dimension_semantics=("parallel",),     # batch tiles are independent
            vmem_limit_bytes=vmem_limit),
    )(s_t)

    out = jnp.transpose(out_t, (2, 0, 1))[:B]      # back to (B, H, W)
    if not last_layer:
        out = out[:, :H - 1, :W - 1]
    return out


def _sinkhorn_forward_ref(s, train_stage=True, last_layer=False):
    """Pure-JAX reference (mirrors the PyTorch code path used above)."""
    s = s.astype(jnp.float32) + EPSILON
    B, H, W = s.shape
    outs = []
    for bidx in range(B):
        K = s[bidx]
        inv_a = jnp.ones((H, 1), jnp.float32).at[-1, 0].set(1.0 / (W - 1))
        b_vec = jnp.ones((1, W), jnp.float32).at[0, -1].set(float(H - 1))
        Kp = inv_a * K

        def cond_fn(c):
            cpt, err_res, _, _ = c
            return jnp.logical_and(cpt < NUM_ITER_MAX, err_res > STOP_THR)

        def body_fn(c):
            cpt, _, u, v = c
            ktu = jnp.sum(K * u, axis=0, keepdims=True)
            v_new = b_vec / ktu
            u_new = 1.0 / jnp.sum(Kp * v_new, axis=1, keepdims=True)
            u_res = jnp.sum(jnp.abs(u - u_new)) ** 2
            v_res = jnp.sum(jnp.abs(v - v_new)) ** 2
            return cpt + 1, u_res + v_res, u_new, v_new

        _, _, u, v = lax.while_loop(
            cond_fn, body_fn,
            (jnp.int32(0), jnp.float32(1.0),
             jnp.ones((H, 1), jnp.float32), jnp.ones((1, W), jnp.float32)))
        s_tem = u * K * v
        if train_stage:
            s_tem = s_tem.at[-1, -1].set(0.0)
        outs.append(s_tem if last_layer else s_tem[:H - 1, :W - 1])
    return jnp.stack(outs)


if __name__ == "__main__":
    key = jax.random.PRNGKey(0)
    B, H, W = 6, 8, 8
    # Affinity-style non-negative input (typical usage of this layer).
    s = jax.random.uniform(key, (B, H, W), dtype=jnp.float32)

    out = sinkhorn_forward(s)
    out = jax.block_until_ready(out)

    ref = _sinkhorn_forward_ref(s)
    np.testing.assert_allclose(np.asarray(out), np.asarray(ref),
                               rtol=2e-3, atol=1e-5)
    print("KERNEL_OK")
</pallas_src>

<mosaic_0001>
module attributes {stable_mosaic.version = 11 : i64} {
  func.func @_sinkhorn_kernel(%arg0: i32, %arg1: memref<8x8x128xf32, #tpu.memory_space<vmem>>, %arg2: memref<8x8x128xf32, #tpu.memory_space<vmem>>) attributes {dimension_semantics = [#tpu.dimension_semantics<parallel>], iteration_bounds = array<i64: 1>, scalar_prefetch = 0 : i64, scratch_operands = 0 : i64, tpu.core_type = #tpu.core_type<tc>, window_params = [{transform_indices = @transform_0, window_bounds = array<i64: 8, 8, 128>}, {transform_indices = @transform_1, window_bounds = array<i64: 8, 8, 128>}]} {
    %c0 = arith.constant 0 : index
    %c0_0 = arith.constant 0 : index
    %c0_1 = arith.constant 0 : index
    %0 = vector.load %arg1[%c0, %c0_0, %c0_1] : memref<8x8x128xf32, #tpu.memory_space<vmem>>, vector<8x8x128xf32>
    %cst = arith.constant 9.99999974E-5 : f32
    %1 = vector.broadcast %cst : f32 to vector<8x8x128xf32>
    %2 = arith.addf %0, %1 : vector<8x8x128xf32>
    %3 = tpu.iota {dimensions = array<i32: 0>} : vector<8x1x128xi32>
    %4 = tpu.iota {dimensions = array<i32: 1>} : vector<1x8x128xi32>
    %c7_i32 = arith.constant 7 : i32
    %5 = vector.broadcast %c7_i32 : i32 to vector<8x1x128xi32>
    %6 = arith.cmpi eq, %3, %5 : vector<8x1x128xi32>
    %cst_2 = arith.constant 0.142857149 : f32
    %cst_3 = arith.constant 1.000000e+00 : f32
    %7 = vector.broadcast %cst_2 : f32 to vector<8x1x128xf32>
    %8 = vector.broadcast %cst_3 : f32 to vector<8x1x128xf32>
    %9 = arith.select %6, %7, %8 : vector<8x1x128xi1>, vector<8x1x128xf32>
    %c7_i32_4 = arith.constant 7 : i32
    %10 = vector.broadcast %c7_i32_4 : i32 to vector<1x8x128xi32>
    %11 = arith.cmpi eq, %4, %10 : vector<1x8x128xi32>
    %cst_5 = arith.constant 7.000000e+00 : f32
    %cst_6 = arith.constant 1.000000e+00 : f32
    %12 = vector.broadcast %cst_5 : f32 to vector<1x8x128xf32>
    %13 = vector.broadcast %cst_6 : f32 to vector<1x8x128xf32>
    %14 = arith.select %11, %12, %13 : vector<1x8x128xi1>, vector<1x8x128xf32>
    %cst_7 = arith.constant 1.000000e+00 : f32
    %15 = vector.broadcast %cst_7 : f32 to vector<8x1x128xf32>
    %cst_8 = arith.constant 1.000000e+00 : f32
    %16 = vector.broadcast %cst_8 : f32 to vector<1x8x128xf32>
    %cst_9 = arith.constant 0.000000e+00 : f32
    %17 = vector.broadcast %cst_9 : f32 to vector<1x1x128xf32>
    %c0_i32 = arith.constant 0 : i32
    %cst_10 = arith.constant 0.000000e+00 : f32
    %18:5 = scf.while (%arg3 = %c0_i32, %arg4 = %cst_10, %arg5 = %17, %arg6 = %15, %arg7 = %16) : (i32, f32, vector<1x1x128xf32>, vector<8x1x128xf32>, vector<1x8x128xf32>) -> (i32, f32, vector<1x1x128xf32>, vector<8x1x128xf32>, vector<1x8x128xf32>) {
      %c100_i32 = arith.constant 100 : i32
      %33 = arith.cmpi slt, %arg3, %c100_i32 : i32
      %cst_17 = arith.constant 5.000000e-01 : f32
      %34 = arith.cmpf olt, %arg4, %cst_17 : f32
      %35 = arith.andi %33, %34 : i1
      scf.condition(%35) %arg3, %arg4, %arg5, %arg6, %arg7 : i32, f32, vector<1x1x128xf32>, vector<8x1x128xf32>, vector<1x8x128xf32>
    } do {
    ^bb0(%arg3: i32, %arg4: f32, %arg5: vector<1x1x128xf32>, %arg6: vector<8x1x128xf32>, %arg7: vector<1x8x128xf32>):
      %c0_i32_17 = arith.constant 0 : i32
      %33 = vector.broadcast %arg6 : vector<8x1x128xf32> to vector<8x8x128xf32>
      %34 = arith.mulf %2, %33 : vector<8x8x128xf32>
      %cst_18 = arith.constant dense<0.000000e+00> : vector<8x128xf32>
      %35 = vector.multi_reduction <add>, %34, %cst_18 [0] : vector<8x8x128xf32> to vector<8x128xf32>
      %36 = vector.shape_cast %35 : vector<8x128xf32> to vector<1x8x128xf32>
      %37 = arith.divf %14, %36 : vector<1x8x128xf32>
      %38 = vector.broadcast %37 : vector<1x8x128xf32> to vector<8x8x128xf32>
      %39 = arith.mulf %2, %38 : vector<8x8x128xf32>
      %cst_19 = arith.constant dense<0.000000e+00> : vector<8x128xf32>
      %40 = vector.multi_reduction <add>, %39, %cst_19 [1] : vector<8x8x128xf32> to vector<8x128xf32>
      %41 = vector.shape_cast %40 : vector<8x128xf32> to vector<8x1x128xf32>
      %42 = arith.mulf %9, %41 : vector<8x1x128xf32>
      %cst_20 = arith.constant 1.000000e+00 : f32
      %43 = vector.broadcast %cst_20 : f32 to vector<8x1x128xf32>
      %44 = arith.divf %43, %42 : vector<8x1x128xf32>
      %45 = arith.subf %arg6, %44 : vector<8x1x128xf32>
      %46 = math.absf %45 : vector<8x1x128xf32>
      %cst_21 = arith.constant dense<0.000000e+00> : vector<1x128xf32>
      %47 = vector.multi_reduction <add>, %46, %cst_21 [0] : vector<8x1x128xf32> to vector<1x128xf32>
      %48 = vector.shape_cast %47 : vector<1x128xf32> to vector<1x1x128xf32>
      %49 = arith.mulf %48, %48 : vector<1x1x128xf32>
      %50 = arith.subf %arg7, %37 : vector<1x8x128xf32>
      %51 = math.absf %50 : vector<1x8x128xf32>
      %cst_22 = arith.constant dense<0.000000e+00> : vector<1x128xf32>
      %52 = vector.multi_reduction <add>, %51, %cst_22 [1] : vector<1x8x128xf32> to vector<1x128xf32>
      %53 = vector.shape_cast %52 : vector<1x128xf32> to vector<1x1x128xf32>
      %54 = arith.mulf %53, %53 : vector<1x1x128xf32>
      %55 = arith.addf %49, %54 : vector<1x1x128xf32>
      %cst_23 = arith.constant 5.000000e-01 : f32
      %56 = vector.broadcast %cst_23 : f32 to vector<1x1x128xf32>
      %57 = arith.cmpf olt, %arg5, %56 : vector<1x1x128xf32>
      %58 = vector.shape_cast %57 : vector<1x1x128xi1> to vector<1x1x128xi1>
      %59 = vector.broadcast %58 : vector<1x1x128xi1> to vector<8x1x128xi1>
      %60 = arith.select %59, %44, %arg6 : vector<8x1x128xi1>, vector<8x1x128xf32>
      %61 = vector.shape_cast %57 : vector<1x1x128xi1> to vector<1x1x128xi1>
      %62 = vector.broadcast %61 : vector<1x1x128xi1> to vector<1x8x128xi1>
      %63 = arith.select %62, %37, %arg7 : vector<1x8x128xi1>, vector<1x8x128xf32>
      %cst_24 = arith.constant 1.000000e-03 : f32
      %64 = vector.broadcast %cst_24 : f32 to vector<1x1x128xf32>
      %65 = arith.cmpf ole, %55, %64 : vector<1x1x128xf32>
      %66 = arith.extui %65 : vector<1x1x128xi1> to vector<1x1x128xi32>
      %67 = arith.sitofp %66 : vector<1x1x128xi32> to vector<1x1x128xf32>
      %68 = arith.maximumf %arg5, %67 : vector<1x1x128xf32>
      %c1_i32 = arith.constant 1 : i32
      %69 = vector.broadcast %60 : vector<8x1x128xf32> to vector<8x8x128xf32>
      %70 = arith.mulf %2, %69 : vector<8x8x128xf32>
      %cst_25 = arith.constant dense<0.000000e+00> : vector<8x128xf32>
      %71 = vector.multi_reduction <add>, %70, %cst_25 [0] : vector<8x8x128xf32> to vector<8x128xf32>
      %72 = vector.shape_cast %71 : vector<8x128xf32> to vector<1x8x128xf32>
      %73 = arith.divf %14, %72 : vector<1x8x128xf32>
      %74 = vector.broadcast %73 : vector<1x8x128xf32> to vector<8x8x128xf32>
      %75 = arith.mulf %2, %74 : vector<8x8x128xf32>
      %cst_26 = arith.constant dense<0.000000e+00> : vector<8x128xf32>
      %76 = vector.multi_reduction <add>, %75, %cst_26 [1] : vector<8x8x128xf32> to vector<8x128xf32>
      %77 = vector.shape_cast %76 : vector<8x128xf32> to vector<8x1x128xf32>
      %78 = arith.mulf %9, %77 : vector<8x1x128xf32>
      %cst_27 = arith.constant 1.000000e+00 : f32
      %79 = vector.broadcast %cst_27 : f32 to vector<8x1x128xf32>
      %80 = arith.divf %79, %78 : vector<8x1x128xf32>
      %81 = arith.subf %60, %80 : vector<8x1x128xf32>
      %82 = math.absf %81 : vector<8x1x128xf32>
      %cst_28 = arith.constant dense<0.000000e+00> : vector<1x128xf32>
      %83 = vector.multi_reduction <add>, %82, %cst_28 [0] : vector<8x1x128xf32> to vector<1x128xf32>
      %84 = vector.shape_cast %83 : vector<1x128xf32> to vector<1x1x128xf32>
      %85 = arith.mulf %84, %84 : vector<1x1x128xf32>
      %86 = arith.subf %63, %73 : vector<1x8x128xf32>
      %87 = math.absf %86 : vector<1x8x128xf32>
      %cst_29 = arith.constant dense<0.000000e+00> : vector<1x128xf32>
      %88 = vector.multi_reduction <add>, %87, %cst_29 [1] : vector<1x8x128xf32> to vector<1x128xf32>
      %89 = vector.shape_cast %88 : vector<1x128xf32> to vector<1x1x128xf32>
      %90 = arith.mulf %89, %89 : vector<1x1x128xf32>
      %91 = arith.addf %85, %90 : vector<1x1x128xf32>
      %cst_30 = arith.constant 5.000000e-01 : f32
      %92 = vector.broadcast %cst_30 : f32 to vector<1x1x128xf32>
      %93 = arith.cmpf olt, %68, %92 : vector<1x1x128xf32>
      %94 = vector.shape_cast %93 : vector<1x1x128xi1> to vector<1x1x128xi1>
      %95 = vector.broadcast %94 : vector<1x1x128xi1> to vector<8x1x128xi1>
      %96 = arith.select %95, %80, %60 : vector<8x1x128xi1>, vector<8x1x128xf32>
      %97 = vector.shape_cast %93 : vector<1x1x128xi1> to vector<1x1x128xi1>
      %98 = vector.broadcast %97 : vector<1x1x128xi1> to vector<1x8x128xi1>
      %99 = arith.select %98, %73, %63 : vector<1x8x128xi1>, vector<1x8x128xf32>
      %cst_31 = arith.constant 1.000000e-03 : f32
      %100 = vector.broadcast %cst_31 : f32 to vector<1x1x128xf32>
      %101 = arith.cmpf ole, %91, %100 : vector<1x1x128xf32>
      %102 = arith.extui %101 : vector<1x1x128xi1> to vector<1x1x128xi32>
      %103 = arith.sitofp %102 : vector<1x1x128xi32> to vector<1x1x128xf32>
      %104 = arith.maximumf %68, %103 : vector<1x1x128xf32>
      %c2_i32 = arith.constant 2 : i32
      %105 = vector.broadcast %96 : vector<8x1x128xf32> to vector<8x8x128xf32>
      %106 = arith.mulf %2, %105 : vector<8x8x128xf32>
      %cst_32 = arith.constant dense<0.000000e+00> : vector<8x128xf32>
      %107 = vector.multi_reduction <add>, %106, %cst_32 [0] : vector<8x8x128xf32> to vector<8x128xf32>
      %108 = vector.shape_cast %107 : vector<8x128xf32> to vector<1x8x128xf32>
      %109 = arith.divf %14, %108 : vector<1x8x128xf32>
      %110 = vector.broadcast %109 : vector<1x8x128xf32> to vector<8x8x128xf32>
      %111 = arith.mulf %2, %110 : vector<8x8x128xf32>
      %cst_33 = arith.constant dense<0.000000e+00> : vector<8x128xf32>
      %112 = vector.multi_reduction <add>, %111, %cst_33 [1] : vector<8x8x128xf32> to vector<8x128xf32>
      %113 = vector.shape_cast %112 : vector<8x128xf32> to vector<8x1x128xf32>
      %114 = arith.mulf %9, %113 : vector<8x1x128xf32>
      %cst_34 = arith.constant 1.000000e+00 : f32
      %115 = vector.broadcast %cst_34 : f32 to vector<8x1x128xf32>
      %116 = arith.divf %115, %114 : vector<8x1x128xf32>
      %117 = arith.subf %96, %116 : vector<8x1x128xf32>
      %118 = math.absf %117 : vector<8x1x128xf32>
      %cst_35 = arith.constant dense<0.000000e+00> : vector<1x128xf32>
      %119 = vector.multi_reduction <add>, %118, %cst_35 [0] : vector<8x1x128xf32> to vector<1x128xf32>
      %120 = vector.shape_cast %119 : vector<1x128xf32> to vector<1x1x128xf32>
      %121 = arith.mulf %120, %120 : vector<1x1x128xf32>
      %122 = arith.subf %99, %109 : vector<1x8x128xf32>
      %123 = math.absf %122 : vector<1x8x128xf32>
      %cst_36 = arith.constant dense<0.000000e+00> : vector<1x128xf32>
      %124 = vector.multi_reduction <add>, %123, %cst_36 [1] : vector<1x8x128xf32> to vector<1x128xf32>
      %125 = vector.shape_cast %124 : vector<1x128xf32> to vector<1x1x128xf32>
      %126 = arith.mulf %125, %125 : vector<1x1x128xf32>
      %127 = arith.addf %121, %126 : vector<1x1x128xf32>
      %cst_37 = arith.constant 5.000000e-01 : f32
      %128 = vector.broadcast %cst_37 : f32 to vector<1x1x128xf32>
      %129 = arith.cmpf olt, %104, %128 : vector<1x1x128xf32>
      %130 = vector.shape_cast %129 : vector<1x1x128xi1> to vector<1x1x128xi1>
      %131 = vector.broadcast %130 : vector<1x1x128xi1> to vector<8x1x128xi1>
      %132 = arith.select %131, %116, %96 : vector<8x1x128xi1>, vector<8x1x128xf32>
      %133 = vector.shape_cast %129 : vector<1x1x128xi1> to vector<1x1x128xi1>
      %134 = vector.broadcast %133 : vector<1x1x128xi1> to vector<1x8x128xi1>
      %135 = arith.select %134, %109, %99 : vector<1x8x128xi1>, vector<1x8x128xf32>
      %cst_38 = arith.constant 1.000000e-03 : f32
      %136 = vector.broadcast %cst_38 : f32 to vector<1x1x128xf32>
      %137 = arith.cmpf ole, %127, %136 : vector<1x1x128xf32>
      %138 = arith.extui %137 : vector<1x1x128xi1> to vector<1x1x128xi32>
      %139 = arith.sitofp %138 : vector<1x1x128xi32> to vector<1x1x128xf32>
      %140 = arith.maximumf %104, %139 : vector<1x1x128xf32>
      %c3_i32 = arith.constant 3 : i32
      %141 = vector.broadcast %132 : vector<8x1x128xf32> to vector<8x8x128xf32>
      %142 = arith.mulf %2, %141 : vector<8x8x128xf32>
      %cst_39 = arith.constant dense<0.000000e+00> : vector<8x128xf32>
      %143 = vector.multi_reduction <add>, %142, %cst_39 [0] : vector<8x8x128xf32> to vector<8x128xf32>
      %144 = vector.shape_cast %143 : vector<8x128xf32> to vector<1x8x128xf32>
      %145 = arith.divf %14, %144 : vector<1x8x128xf32>
      %146 = vector.broadcast %145 : vector<1x8x128xf32> to vector<8x8x128xf32>
      %147 = arith.mulf %2, %146 : vector<8x8x128xf32>
      %cst_40 = arith.constant dense<0.000000e+00> : vector<8x128xf32>
      %148 = vector.multi_reduction <add>, %147, %cst_40 [1] : vector<8x8x128xf32> to vector<8x128xf32>
      %149 = vector.shape_cast %148 : vector<8x128xf32> to vector<8x1x128xf32>
      %150 = arith.mulf %9, %149 : vector<8x1x128xf32>
      %cst_41 = arith.constant 1.000000e+00 : f32
      %151 = vector.broadcast %cst_41 : f32 to vector<8x1x128xf32>
      %152 = arith.divf %151, %150 : vector<8x1x128xf32>
      %153 = arith.subf %132, %152 : vector<8x1x128xf32>
      %154 = math.absf %153 : vector<8x1x128xf32>
      %cst_42 = arith.constant dense<0.000000e+00> : vector<1x128xf32>
      %155 = vector.multi_reduction <add>, %154, %cst_42 [0] : vector<8x1x128xf32> to vector<1x128xf32>
      %156 = vector.shape_cast %155 : vector<1x128xf32> to vector<1x1x128xf32>
      %157 = arith.mulf %156, %156 : vector<1x1x128xf32>
      %158 = arith.subf %135, %145 : vector<1x8x128xf32>
      %159 = math.absf %158 : vector<1x8x128xf32>
      %cst_43 = arith.constant dense<0.000000e+00> : vector<1x128xf32>
      %160 = vector.multi_reduction <add>, %159, %cst_43 [1] : vector<1x8x128xf32> to vector<1x128xf32>
      %161 = vector.shape_cast %160 : vector<1x128xf32> to vector<1x1x128xf32>
      %162 = arith.mulf %161, %161 : vector<1x1x128xf32>
      %163 = arith.addf %157, %162 : vector<1x1x128xf32>
      %cst_44 = arith.constant 5.000000e-01 : f32
      %164 = vector.broadcast %cst_44 : f32 to vector<1x1x128xf32>
      %165 = arith.cmpf olt, %140, %164 : vector<1x1x128xf32>
      %166 = vector.shape_cast %165 : vector<1x1x128xi1> to vector<1x1x128xi1>
      %167 = vector.broadcast %166 : vector<1x1x128xi1> to vector<8x1x128xi1>
      %168 = arith.select %167, %152, %132 : vector<8x1x128xi1>, vector<8x1x128xf32>
      %169 = vector.shape_cast %165 : vector<1x1x128xi1> to vector<1x1x128xi1>
      %170 = vector.broadcast %169 : vector<1x1x128xi1> to vector<1x8x128xi1>
      %171 = arith.select %170, %145, %135 : vector<1x8x128xi1>, vector<1x8x128xf32>
      %cst_45 = arith.constant 1.000000e-03 : f32
      %172 = vector.broadcast %cst_45 : f32 to vector<1x1x128xf32>
      %173 = arith.cmpf ole, %163, %172 : vector<1x1x128xf32>
      %174 = arith.extui %173 : vector<1x1x128xi1> to vector<1x1x128xi32>
      %175 = arith.sitofp %174 : vector<1x1x128xi32> to vector<1x1x128xf32>
      %176 = arith.maximumf %140, %175 : vector<1x1x128xf32>
      %c4_i32 = arith.constant 4 : i32
      %177 = vector.broadcast %168 : vector<8x1x128xf32> to vector<8x8x128xf32>
      %178 = arith.mulf %2, %177 : vector<8x8x128xf32>
      %cst_46 = arith.constant dense<0.000000e+00> : vector<8x128xf32>
      %179 = vector.multi_reduction <add>, %178, %cst_46 [0] : vector<8x8x128xf32> to vector<8x128xf32>
      %180 = vector.shape_cast %179 : vector<8x128xf32> to vector<1x8x128xf32>
      %181 = arith.divf %14, %180 : vector<1x8x128xf32>
      %182 = vector.broadcast %181 : vector<1x8x128xf32> to vector<8x8x128xf32>
      %183 = arith.mulf %2, %182 : vector<8x8x128xf32>
      %cst_47 = arith.constant dense<0.000000e+00> : vector<8x128xf32>
      %184 = vector.multi_reduction <add>, %183, %cst_47 [1] : vector<8x8x128xf32> to vector<8x128xf32>
      %185 = vector.shape_cast %184 : vector<8x128xf32> to vector<8x1x128xf32>
      %186 = arith.mulf %9, %185 : vector<8x1x128xf32>
      %cst_48 = arith.constant 1.000000e+00 : f32
      %187 = vector.broadcast %cst_48 : f32 to vector<8x1x128xf32>
      %188 = arith.divf %187, %186 : vector<8x1x128xf32>
      %189 = arith.subf %168, %188 : vector<8x1x128xf32>
      %190 = math.absf %189 : vector<8x1x128xf32>
      %cst_49 = arith.constant dense<0.000000e+00> : vector<1x128xf32>
      %191 = vector.multi_reduction <add>, %190, %cst_49 [0] : vector<8x1x128xf32> to vector<1x128xf32>
      %192 = vector.shape_cast %191 : vector<1x128xf32> to vector<1x1x128xf32>
      %193 = arith.mulf %192, %192 : vector<1x1x128xf32>
      %194 = arith.subf %171, %181 : vector<1x8x128xf32>
      %195 = math.absf %194 : vector<1x8x128xf32>
      %cst_50 = arith.constant dense<0.000000e+00> : vector<1x128xf32>
      %196 = vector.multi_reduction <add>, %195, %cst_50 [1] : vector<1x8x128xf32> to vector<1x128xf32>
      %197 = vector.shape_cast %196 : vector<1x128xf32> to vector<1x1x128xf32>
      %198 = arith.mulf %197, %197 : vector<1x1x128xf32>
      %199 = arith.addf %193, %198 : vector<1x1x128xf32>
      %cst_51 = arith.constant 5.000000e-01 : f32
      %200 = vector.broadcast %cst_51 : f32 to vector<1x1x128xf32>
      %201 = arith.cmpf olt, %176, %200 : vector<1x1x128xf32>
      %202 = vector.shape_cast %201 : vector<1x1x128xi1> to vector<1x1x128xi1>
      %203 = vector.broadcast %202 : vector<1x1x128xi1> to vector<8x1x128xi1>
      %204 = arith.select %203, %188, %168 : vector<8x1x128xi1>, vector<8x1x128xf32>
      %205 = vector.shape_cast %201 : vector<1x1x128xi1> to vector<1x1x128xi1>
      %206 = vector.broadcast %205 : vector<1x1x128xi1> to vector<1x8x128xi1>
      %207 = arith.select %206, %181, %171 : vector<1x8x128xi1>, vector<1x8x128xf32>
      %cst_52 = arith.constant 1.000000e-03 : f32
      %208 = vector.broadcast %cst_52 : f32 to vector<1x1x128xf32>
      %209 = arith.cmpf ole, %199, %208 : vector<1x1x128xf32>
      %210 = arith.extui %209 : vector<1x1x128xi1> to vector<1x1x128xi32>
      %211 = arith.sitofp %210 : vector<1x1x128xi32> to vector<1x1x128xf32>
      %212 = arith.maximumf %176, %211 : vector<1x1x128xf32>
      %c5_i32 = arith.constant 5 : i32
      %213 = vector.broadcast %204 : vector<8x1x128xf32> to vector<8x8x128xf32>
      %214 = arith.mulf %2, %213 : vector<8x8x128xf32>
      %cst_53 = arith.constant dense<0.000000e+00> : vector<8x128xf32>
      %215 = vector.multi_reduction <add>, %214, %cst_53 [0] : vector<8x8x128xf32> to vector<8x128xf32>
      %216 = vector.shape_cast %215 : vector<8x128xf32> to vector<1x8x128xf32>
      %217 = arith.divf %14, %216 : vector<1x8x128xf32>
      %218 = vector.broadcast %217 : vector<1x8x128xf32> to vector<8x8x128xf32>
      %219 = arith.mulf %2, %218 : vector<8x8x128xf32>
      %cst_54 = arith.constant dense<0.000000e+00> : vector<8x128xf32>
      %220 = vector.multi_reduction <add>, %219, %cst_54 [1] : vector<8x8x128xf32> to vector<8x128xf32>
      %221 = vector.shape_cast %220 : vector<8x128xf32> to vector<8x1x128xf32>
      %222 = arith.mulf %9, %221 : vector<8x1x128xf32>
      %cst_55 = arith.constant 1.000000e+00 : f32
      %223 = vector.broadcast %cst_55 : f32 to vector<8x1x128xf32>
      %224 = arith.divf %223, %222 : vector<8x1x128xf32>
      %225 = arith.subf %204, %224 : vector<8x1x128xf32>
      %226 = math.absf %225 : vector<8x1x128xf32>
      %cst_56 = arith.constant dense<0.000000e+00> : vector<1x128xf32>
      %227 = vector.multi_reduction <add>, %226, %cst_56 [0] : vector<8x1x128xf32> to vector<1x128xf32>
      %228 = vector.shape_cast %227 : vector<1x128xf32> to vector<1x1x128xf32>
      %229 = arith.mulf %228, %228 : vector<1x1x128xf32>
      %230 = arith.subf %207, %217 : vector<1x8x128xf32>
      %231 = math.absf %230 : vector<1x8x128xf32>
      %cst_57 = arith.constant dense<0.000000e+00> : vector<1x128xf32>
      %232 = vector.multi_reduction <add>, %231, %cst_57 [1] : vector<1x8x128xf32> to vector<1x128xf32>
      %233 = vector.shape_cast %232 : vector<1x128xf32> to vector<1x1x128xf32>
      %234 = arith.mulf %233, %233 : vector<1x1x128xf32>
      %235 = arith.addf %229, %234 : vector<1x1x128xf32>
      %cst_58 = arith.constant 5.000000e-01 : f32
      %236 = vector.broadcast %cst_58 : f32 to vector<1x1x128xf32>
      %237 = arith.cmpf olt, %212, %236 : vector<1x1x128xf32>
      %238 = vector.shape_cast %237 : vector<1x1x128xi1> to vector<1x1x128xi1>
      %239 = vector.broadcast %238 : vector<1x1x128xi1> to vector<8x1x128xi1>
      %240 = arith.select %239, %224, %204 : vector<8x1x128xi1>, vector<8x1x128xf32>
      %241 = vector.shape_cast %237 : vector<1x1x128xi1> to vector<1x1x128xi1>
      %242 = vector.broadcast %241 : vector<1x1x128xi1> to vector<1x8x128xi1>
      %243 = arith.select %242, %217, %207 : vector<1x8x128xi1>, vector<1x8x128xf32>
      %cst_59 = arith.constant 1.000000e-03 : f32
      %244 = vector.broadcast %cst_59 : f32 to vector<1x1x128xf32>
      %245 = arith.cmpf ole, %235, %244 : vector<1x1x128xf32>
      %246 = arith.extui %245 : vector<1x1x128xi1> to vector<1x1x128xi32>
      %247 = arith.sitofp %246 : vector<1x1x128xi32> to vector<1x1x128xf32>
      %248 = arith.maximumf %212, %247 : vector<1x1x128xf32>
      %c6_i32 = arith.constant 6 : i32
      %249 = vector.broadcast %240 : vector<8x1x128xf32> to vector<8x8x128xf32>
      %250 = arith.mulf %2, %249 : vector<8x8x128xf32>
      %cst_60 = arith.constant dense<0.000000e+00> : vector<8x128xf32>
      %251 = vector.multi_reduction <add>, %250, %cst_60 [0] : vector<8x8x128xf32> to vector<8x128xf32>
      %252 = vector.shape_cast %251 : vector<8x128xf32> to vector<1x8x128xf32>
      %253 = arith.divf %14, %252 : vector<1x8x128xf32>
      %254 = vector.broadcast %253 : vector<1x8x128xf32> to vector<8x8x128xf32>
      %255 = arith.mulf %2, %254 : vector<8x8x128xf32>
      %cst_61 = arith.constant dense<0.000000e+00> : vector<8x128xf32>
      %256 = vector.multi_reduction <add>, %255, %cst_61 [1] : vector<8x8x128xf32> to vector<8x128xf32>
      %257 = vector.shape_cast %256 : vector<8x128xf32> to vector<8x1x128xf32>
      %258 = arith.mulf %9, %257 : vector<8x1x128xf32>
      %cst_62 = arith.constant 1.000000e+00 : f32
      %259 = vector.broadcast %cst_62 : f32 to vector<8x1x128xf32>
      %260 = arith.divf %259, %258 : vector<8x1x128xf32>
      %261 = arith.subf %240, %260 : vector<8x1x128xf32>
      %262 = math.absf %261 : vector<8x1x128xf32>
      %cst_63 = arith.constant dense<0.000000e+00> : vector<1x128xf32>
      %263 = vector.multi_reduction <add>, %262, %cst_63 [0] : vector<8x1x128xf32> to vector<1x128xf32>
      %264 = vector.shape_cast %263 : vector<1x128xf32> to vector<1x1x128xf32>
      %265 = arith.mulf %264, %264 : vector<1x1x128xf32>
      %266 = arith.subf %243, %253 : vector<1x8x128xf32>
      %267 = math.absf %266 : vector<1x8x128xf32>
      %cst_64 = arith.constant dense<0.000000e+00> : vector<1x128xf32>
      %268 = vector.multi_reduction <add>, %267, %cst_64 [1] : vector<1x8x128xf32> to vector<1x128xf32>
      %269 = vector.shape_cast %268 : vector<1x128xf32> to vector<1x1x128xf32>
      %270 = arith.mulf %269, %269 : vector<1x1x128xf32>
      %271 = arith.addf %265, %270 : vector<1x1x128xf32>
      %cst_65 = arith.constant 5.000000e-01 : f32
      %272 = vector.broadcast %cst_65 : f32 to vector<1x1x128xf32>
      %273 = arith.cmpf olt, %248, %272 : vector<1x1x128xf32>
      %274 = vector.shape_cast %273 : vector<1x1x128xi1> to vector<1x1x128xi1>
      %275 = vector.broadcast %274 : vector<1x1x128xi1> to vector<8x1x128xi1>
      %276 = arith.select %275, %260, %240 : vector<8x1x128xi1>, vector<8x1x128xf32>
      %277 = vector.shape_cast %273 : vector<1x1x128xi1> to vector<1x1x128xi1>
      %278 = vector.broadcast %277 : vector<1x1x128xi1> to vector<1x8x128xi1>
      %279 = arith.select %278, %253, %243 : vector<1x8x128xi1>, vector<1x8x128xf32>
      %cst_66 = arith.constant 1.000000e-03 : f32
      %280 = vector.broadcast %cst_66 : f32 to vector<1x1x128xf32>
      %281 = arith.cmpf ole, %271, %280 : vector<1x1x128xf32>
      %282 = arith.extui %281 : vector<1x1x128xi1> to vector<1x1x128xi32>
      %283 = arith.sitofp %282 : vector<1x1x128xi32> to vector<1x1x128xf32>
      %284 = arith.maximumf %248, %283 : vector<1x1x128xf32>
      %c7_i32_67 = arith.constant 7 : i32
      %285 = vector.broadcast %276 : vector<8x1x128xf32> to vector<8x8x128xf32>
      %286 = arith.mulf %2, %285 : vector<8x8x128xf32>
      %cst_68 = arith.constant dense<0.000000e+00> : vector<8x128xf32>
      %287 = vector.multi_reduction <add>, %286, %cst_68 [0] : vector<8x8x128xf32> to vector<8x128xf32>
      %288 = vector.shape_cast %287 : vector<8x128xf32> to vector<1x8x128xf32>
      %289 = arith.divf %14, %288 : vector<1x8x128xf32>
      %290 = vector.broadcast %289 : vector<1x8x128xf32> to vector<8x8x128xf32>
      %291 = arith.mulf %2, %290 : vector<8x8x128xf32>
      %cst_69 = arith.constant dense<0.000000e+00> : vector<8x128xf32>
      %292 = vector.multi_reduction <add>, %291, %cst_69 [1] : vector<8x8x128xf32> to vector<8x128xf32>
      %293 = vector.shape_cast %292 : vector<8x128xf32> to vector<8x1x128xf32>
      %294 = arith.mulf %9, %293 : vector<8x1x128xf32>
      %cst_70 = arith.constant 1.000000e+00 : f32
      %295 = vector.broadcast %cst_70 : f32 to vector<8x1x128xf32>
      %296 = arith.divf %295, %294 : vector<8x1x128xf32>
      %297 = arith.subf %276, %296 : vector<8x1x128xf32>
      %298 = math.absf %297 : vector<8x1x128xf32>
      %cst_71 = arith.constant dense<0.000000e+00> : vector<1x128xf32>
      %299 = vector.multi_reduction <add>, %298, %cst_71 [0] : vector<8x1x128xf32> to vector<1x128xf32>
      %300 = vector.shape_cast %299 : vector<1x128xf32> to vector<1x1x128xf32>
      %301 = arith.mulf %300, %300 : vector<1x1x128xf32>
      %302 = arith.subf %279, %289 : vector<1x8x128xf32>
      %303 = math.absf %302 : vector<1x8x128xf32>
      %cst_72 = arith.constant dense<0.000000e+00> : vector<1x128xf32>
      %304 = vector.multi_reduction <add>, %303, %cst_72 [1] : vector<1x8x128xf32> to vector<1x128xf32>
      %305 = vector.shape_cast %304 : vector<1x128xf32> to vector<1x1x128xf32>
      %306 = arith.mulf %305, %305 : vector<1x1x128xf32>
      %307 = arith.addf %301, %306 : vector<1x1x128xf32>
      %cst_73 = arith.constant 5.000000e-01 : f32
      %308 = vector.broadcast %cst_73 : f32 to vector<1x1x128xf32>
      %309 = arith.cmpf olt, %284, %308 : vector<1x1x128xf32>
      %310 = vector.shape_cast %309 : vector<1x1x128xi1> to vector<1x1x128xi1>
      %311 = vector.broadcast %310 : vector<1x1x128xi1> to vector<8x1x128xi1>
      %312 = arith.select %311, %296, %276 : vector<8x1x128xi1>, vector<8x1x128xf32>
      %313 = vector.shape_cast %309 : vector<1x1x128xi1> to vector<1x1x128xi1>
      %314 = vector.broadcast %313 : vector<1x1x128xi1> to vector<1x8x128xi1>
      %315 = arith.select %314, %289, %279 : vector<1x8x128xi1>, vector<1x8x128xf32>
      %cst_74 = arith.constant 1.000000e-03 : f32
      %316 = vector.broadcast %cst_74 : f32 to vector<1x1x128xf32>
      %317 = arith.cmpf ole, %307, %316 : vector<1x1x128xf32>
      %318 = arith.extui %317 : vector<1x1x128xi1> to vector<1x1x128xi32>
      %319 = arith.sitofp %318 : vector<1x1x128xi32> to vector<1x1x128xf32>
      %320 = arith.maximumf %284, %319 : vector<1x1x128xf32>
      %c8_i32 = arith.constant 8 : i32
      %321 = vector.broadcast %312 : vector<8x1x128xf32> to vector<8x8x128xf32>
      %322 = arith.mulf %2, %321 : vector<8x8x128xf32>
      %cst_75 = arith.constant dense<0.000000e+00> : vector<8x128xf32>
      %323 = vector.multi_reduction <add>, %322, %cst_75 [0] : vector<8x8x128xf32> to vector<8x128xf32>
      %324 = vector.shape_cast %323 : vector<8x128xf32> to vector<1x8x128xf32>
      %325 = arith.divf %14, %324 : vector<1x8x128xf32>
      %326 = vector.broadcast %325 : vector<1x8x128xf32> to vector<8x8x128xf32>
      %327 = arith.mulf %2, %326 : vector<8x8x128xf32>
      %cst_76 = arith.constant dense<0.000000e+00> : vector<8x128xf32>
      %328 = vector.multi_reduction <add>, %327, %cst_76 [1] : vector<8x8x128xf32> to vector<8x128xf32>
      %329 = vector.shape_cast %328 : vector<8x128xf32> to vector<8x1x128xf32>
      %330 = arith.mulf %9, %329 : vector<8x1x128xf32>
      %cst_77 = arith.constant 1.000000e+00 : f32
      %331 = vector.broadcast %cst_77 : f32 to vector<8x1x128xf32>
      %332 = arith.divf %331, %330 : vector<8x1x128xf32>
      %333 = arith.subf %312, %332 : vector<8x1x128xf32>
      %334 = math.absf %333 : vector<8x1x128xf32>
      %cst_78 = arith.constant dense<0.000000e+00> : vector<1x128xf32>
      %335 = vector.multi_reduction <add>, %334, %cst_78 [0] : vector<8x1x128xf32> to vector<1x128xf32>
      %336 = vector.shape_cast %335 : vector<1x128xf32> to vector<1x1x128xf32>
      %337 = arith.mulf %336, %336 : vector<1x1x128xf32>
      %338 = arith.subf %315, %325 : vector<1x8x128xf32>
      %339 = math.absf %338 : vector<1x8x128xf32>
      %cst_79 = arith.constant dense<0.000000e+00> : vector<1x128xf32>
      %340 = vector.multi_reduction <add>, %339, %cst_79 [1] : vector<1x8x128xf32> to vector<1x128xf32>
      %341 = vector.shape_cast %340 : vector<1x128xf32> to vector<1x1x128xf32>
      %342 = arith.mulf %341, %341 : vector<1x1x128xf32>
      %343 = arith.addf %337, %342 : vector<1x1x128xf32>
      %cst_80 = arith.constant 5.000000e-01 : f32
      %344 = vector.broadcast %cst_80 : f32 to vector<1x1x128xf32>
      %345 = arith.cmpf olt, %320, %344 : vector<1x1x128xf32>
      %346 = vector.shape_cast %345 : vector<1x1x128xi1> to vector<1x1x128xi1>
      %347 = vector.broadcast %346 : vector<1x1x128xi1> to vector<8x1x128xi1>
      %348 = arith.select %347, %332, %312 : vector<8x1x128xi1>, vector<8x1x128xf32>
      %349 = vector.shape_cast %345 : vector<1x1x128xi1> to vector<1x1x128xi1>
      %350 = vector.broadcast %349 : vector<1x1x128xi1> to vector<1x8x128xi1>
      %351 = arith.select %350, %325, %315 : vector<1x8x128xi1>, vector<1x8x128xf32>
      %cst_81 = arith.constant 1.000000e-03 : f32
      %352 = vector.broadcast %cst_81 : f32 to vector<1x1x128xf32>
      %353 = arith.cmpf ole, %343, %352 : vector<1x1x128xf32>
      %354 = arith.extui %353 : vector<1x1x128xi1> to vector<1x1x128xi32>
      %355 = arith.sitofp %354 : vector<1x1x128xi32> to vector<1x1x128xf32>
      %356 = arith.maximumf %320, %355 : vector<1x1x128xf32>
      %c9_i32 = arith.constant 9 : i32
      %357 = vector.broadcast %348 : vector<8x1x128xf32> to vector<8x8x128xf32>
      %358 = arith.mulf %2, %357 : vector<8x8x128xf32>
      %cst_82 = arith.constant dense<0.000000e+00> : vector<8x128xf32>
      %359 = vector.multi_reduction <add>, %358, %cst_82 [0] : vector<8x8x128xf32> to vector<8x128xf32>
      %360 = vector.shape_cast %359 : vector<8x128xf32> to vector<1x8x128xf32>
      %361 = arith.divf %14, %360 : vector<1x8x128xf32>
      %362 = vector.broadcast %361 : vector<1x8x128xf32> to vector<8x8x128xf32>
      %363 = arith.mulf %2, %362 : vector<8x8x128xf32>
      %cst_83 = arith.constant dense<0.000000e+00> : vector<8x128xf32>
      %364 = vector.multi_reduction <add>, %363, %cst_83 [1] : vector<8x8x128xf32> to vector<8x128xf32>
      %365 = vector.shape_cast %364 : vector<8x128xf32> to vector<8x1x128xf32>
      %366 = arith.mulf %9, %365 : vector<8x1x128xf32>
      %cst_84 = arith.constant 1.000000e+00 : f32
      %367 = vector.broadcast %cst_84 : f32 to vector<8x1x128xf32>
      %368 = arith.divf %367, %366 : vector<8x1x128xf32>
      %369 = arith.subf %348, %368 : vector<8x1x128xf32>
      %370 = math.absf %369 : vector<8x1x128xf32>
      %cst_85 = arith.constant dense<0.000000e+00> : vector<1x128xf32>
      %371 = vector.multi_reduction <add>, %370, %cst_85 [0] : vector<8x1x128xf32> to vector<1x128xf32>
      %372 = vector.shape_cast %371 : vector<1x128xf32> to vector<1x1x128xf32>
      %373 = arith.mulf %372, %372 : vector<1x1x128xf32>
      %374 = arith.subf %351, %361 : vector<1x8x128xf32>
      %375 = math.absf %374 : vector<1x8x128xf32>
      %cst_86 = arith.constant dense<0.000000e+00> : vector<1x128xf32>
      %376 = vector.multi_reduction <add>, %375, %cst_86 [1] : vector<1x8x128xf32> to vector<1x128xf32>
      %377 = vector.shape_cast %376 : vector<1x128xf32> to vector<1x1x128xf32>
      %378 = arith.mulf %377, %377 : vector<1x1x128xf32>
      %379 = arith.addf %373, %378 : vector<1x1x128xf32>
      %cst_87 = arith.constant 5.000000e-01 : f32
      %380 = vector.broadcast %cst_87 : f32 to vector<1x1x128xf32>
      %381 = arith.cmpf olt, %356, %380 : vector<1x1x128xf32>
      %382 = vector.shape_cast %381 : vector<1x1x128xi1> to vector<1x1x128xi1>
      %383 = vector.broadcast %382 : vector<1x1x128xi1> to vector<8x1x128xi1>
      %384 = arith.select %383, %368, %348 : vector<8x1x128xi1>, vector<8x1x128xf32>
      %385 = vector.shape_cast %381 : vector<1x1x128xi1> to vector<1x1x128xi1>
      %386 = vector.broadcast %385 : vector<1x1x128xi1> to vector<1x8x128xi1>
      %387 = arith.select %386, %361, %351 : vector<1x8x128xi1>, vector<1x8x128xf32>
      %cst_88 = arith.constant 1.000000e-03 : f32
      %388 = vector.broadcast %cst_88 : f32 to vector<1x1x128xf32>
      %389 = arith.cmpf ole, %379, %388 : vector<1x1x128xf32>
      %390 = arith.extui %389 : vector<1x1x128xi1> to vector<1x1x128xi32>
      %391 = arith.sitofp %390 : vector<1x1x128xi32> to vector<1x1x128xf32>
      %392 = arith.maximumf %356, %391 : vector<1x1x128xf32>
      %c10_i32 = arith.constant 10 : i32
      %c10_i32_89 = arith.constant 10 : i32
      %393 = arith.addi %arg3, %c10_i32_89 : i32
      %394 = vector.shape_cast %392 : vector<1x1x128xf32> to vector<1x1x1x128xf32>
      %cst_90 = arith.constant dense<0x7F800000> : vector<1xf32>
      %395 = vector.multi_reduction <minimumf>, %394, %cst_90 [1, 2, 3] : vector<1x1x1x128xf32> to vector<1xf32>
      %396 = vector.shape_cast %395 : vector<1xf32> to vector<1x1x1x1xf32>
      %397 = vector.extract %396[0, 0, 0, 0] : f32 from vector<1x1x1x1xf32>
      scf.yield %393, %397, %392, %384, %387 : i32, f32, vector<1x1x128xf32>, vector<8x1x128xf32>, vector<1x8x128xf32>
    }
    %19 = vector.broadcast %18#3 : vector<8x1x128xf32> to vector<8x8x128xf32>
    %20 = arith.mulf %19, %2 : vector<8x8x128xf32>
    %21 = vector.broadcast %18#4 : vector<1x8x128xf32> to vector<8x8x128xf32>
    %22 = arith.mulf %20, %21 : vector<8x8x128xf32>
    %c7_i32_11 = arith.constant 7 : i32
    %23 = vector.broadcast %c7_i32_11 : i32 to vector<8x1x128xi32>
    %24 = arith.cmpi eq, %3, %23 : vector<8x1x128xi32>
    %c7_i32_12 = arith.constant 7 : i32
    %25 = vector.broadcast %c7_i32_12 : i32 to vector<1x8x128xi32>
    %26 = arith.cmpi eq, %4, %25 : vector<1x8x128xi32>
    %27 = vector.broadcast %24 : vector<8x1x128xi1> to vector<8x8x128xi1>
    %28 = vector.broadcast %26 : vector<1x8x128xi1> to vector<8x8x128xi1>
    %29 = arith.andi %27, %28 : vector<8x8x128xi1>
    %cst_13 = arith.constant 0.000000e+00 : f32
    %30 = vector.broadcast %cst_13 : f32 to vector<8x8x128xf32>
    %31 = arith.select %29, %30, %22 : vector<8x8x128xi1>, vector<8x8x128xf32>
    %c0_14 = arith.constant 0 : index
    %c0_15 = arith.constant 0 : index
    %c0_16 = arith.constant 0 : index
    %32 = vector.load %arg2[%c0_14, %c0_15, %c0_16] : memref<8x8x128xf32, #tpu.memory_space<vmem>>, vector<8x8x128xf32>
    tpu.vector_store %arg2[%c0_14, %c0_15, %c0_16], %31 {strides = array<i32>} : memref<8x8x128xf32, #tpu.memory_space<vmem>>, vector<8x8x128xf32>,
    return
  }
  func.func @transform_0(%arg0: i32) -> (i32, i32, i32) {
    %c0_i32 = arith.constant 0 : i32
    %c0_i32_0 = arith.constant 0 : i32
    %c0_i32_1 = arith.constant 0 : i32
    return %c0_i32, %c0_i32_0, %arg0 : i32, i32, i32
  }
  func.func @transform_1(%arg0: i32) -> (i32, i32, i32) {
    %c0_i32 = arith.constant 0 : i32
    %c0_i32_0 = arith.constant 0 : i32
    %c0_i32_1 = arith.constant 0 : i32
    return %c0_i32, %c0_i32_0, %arg0 : i32, i32, i32
  }
}

</mosaic_0001>

<llo_original>
// kernel: tpu_custom_call.1
$region0: #{tpu_custom_call.1}
  #allocation0 [shape = 'u32[]', space=smem, size = 0x4, offset = 0x4, fixed_abs, tag = 'smem constant byte address 0x4 - core index']
  #allocation1 [shape = 'u32[144,128]{1,0:T(1,128)}', space=vmem, size = 0x12000, scoped, tag = 'internal scratch']
  %s0 = inlined_call_operand.hbm [shape: f32[8,8,128], index: 0, kind: input, shape index: {}]
  %s1 = inlined_call_operand.hbm [shape: f32[8,8,128], index: 1, kind: output, shape index: {}]
  %s2 = sld [smem:[#allocation0]]
  $region25: #{tpu_custom_call.1} parent=0
    _
  %s4 = ssub.s32 1, %s2
  %s5 = scalar_select 0, %s4, %s2
  $region1: #{tpu_custom_call.1} parent=0
    #allocation2 [shape = 'u8[32768]{0}', space=vmem, size = 0x8000, scoped, tag = 'input window, operand 0, single buffered']
    #allocation3 [shape = 's32[1]{0}', space=sflag, size = 0x4, scoped, tag = 'scoped memory for tpu_custom_call.1']
    #allocation4 [shape = 's32[1]{0}', space=sflag, size = 0x4, scoped, tag = 'scoped memory for tpu_custom_call.1']
    #allocation5 [shape = 'u8[32768]{0}', space=vmem, size = 0x8000, scoped, tag = 'output window, operand 0, single buffered']
    %6 = vsyncpa [#allocation3], 0
    %7 = vsyncpa [#allocation4], 0
    // Predicated region
    $region2: #{tpu_custom_call.1} parent=1 // pred_check
      _
    $region3: #{tpu_custom_call.1} parent=1 // pred_check_branch
      %9 = sbr.rel (0) target = $region5
    $region4: #{tpu_custom_call.1} parent=1 // pred_region
      %s11 = ssub.s32 1024, 1024
      %12 = vsyncadd [#allocation3], %s11
      %s13 = sshll.u32 [#allocation2], 4
      %s14 = int_to_ptr.vmem [resolvable:$true] %s13
      %19 = dma.hbm_to_vmem [thread:$0]  %s0, 1024, %s14, [#allocation3], 128, 128, 8
    $region5: #{tpu_custom_call.1} parent=1 // pred_fallthru
      _
    // Predicated region
    $region6: #{tpu_custom_call.1} parent=1 // pred_check
      _
    $region7: #{tpu_custom_call.1} parent=1 // pred_check_branch
      %21 = sbr.rel (0) target = $region9
    $region8: #{tpu_custom_call.1} parent=1 // pred_region
      %22 = dma.done [#allocation3], 1024
    $region9: #{tpu_custom_call.1} parent=1 // pred_fallthru
      _
    %v23 = vld [vmem:[#allocation2] sm:$0xff]
    %v24 = vld [vmem:[#allocation2 + $0x8] sm:$0xff]
    %v25 = vld [vmem:[#allocation2 + $0x10] sm:$0xff]
    %v26 = vld [vmem:[#allocation2 + $0x18] sm:$0xff]
    %v27 = vld [vmem:[#allocation2 + $0x20] sm:$0xff]
    %v28 = vld [vmem:[#allocation2 + $0x28] sm:$0xff]
    %v29 = vld [vmem:[#allocation2 + $0x30] sm:$0xff]
    %v30 = vld [vmem:[#allocation2 + $0x38] sm:$0xff]
    %v31 = vadd.f32 %v23, 0.0001
    %v32 = vadd.f32 %v24, 0.0001
    %v33 = vadd.f32 %v25, 0.0001
    %v34 = vadd.f32 %v26, 0.0001
    %v35 = vadd.f32 %v27, 0.0001
    %v36 = vadd.f32 %v28, 0.0001
    %v37 = vadd.f32 %v29, 0.0001
    %v38 = vadd.f32 %v30, 0.0001
    %v39 = vlaneseq
    %v40 = vshrl.u32 %v39, 7
    %vm41 = vcmp.eq.s32.totalorder %v40, 7
    %v42 = vsel %vm41, 7.0, 1.0
    // While loop
    $region10: #{tpu_custom_call.1} parent=1 // loop_pre_header
      _
    $region11: #{tpu_custom_call.1} parent=1 // loop_header
      %s44 = sphi 0, %s1462
      %s45 = sphi 0.0, %s1465
      %v46 = vphi 0.0, %v1461
      %v47 = vphi 1.0, %v1449
      %v48 = vphi 1.0, %v1450
      %v49 = vphi 1.0, %v1451
      %v50 = vphi 1.0, %v1452
      %v51 = vphi 1.0, %v1453
      %v52 = vphi 1.0, %v1454
      %v53 = vphi 1.0, %v1455
      %v54 = vphi 1.0, %v1456
      %v55 = vphi 1.0, %v1457
      %p56 = scmp.lt.s32.totalorder %s44, 100
      %p57 = scmp.lt.f32.partialorder %s45, 0.5
      %p58 = pnand %p56, %p57
      %p59 = pneg %p58
    $region12: #{tpu_custom_call.1} parent=1 // loop_header_branch
      %61 = sbr.rel (%p58) target = $region16
    $region13: #{tpu_custom_call.1} parent=1 // loop_body
      %v62 = vmul.f32 %v31, %v47
      %v63 = vmul.f32 %v32, %v48
      %v64 = vmul.f32 %v33, %v49
      %v65 = vmul.f32 %v34, %v50
      %v66 = vmul.f32 %v35, %v51
      %v67 = vmul.f32 %v36, %v52
      %v68 = vmul.f32 %v37, %v53
      %v69 = vmul.f32 %v38, %v54
      %v70 = vadd.f32 %v62, %v63
      %v71 = vadd.f32 %v70, %v64
      %v72 = vadd.f32 %v71, %v65
      %v73 = vadd.f32 %v72, %v66
      %v74 = vadd.f32 %v73, %v67
      %v75 = vadd.f32 %v74, %v68
      %v76 = vadd.f32 %v75, %v69
      %v77 = vrcp.pop %v76
      %v78 = vmul.f32 %v42, %v77
      %v79 = vmul.f32 %v31, %v78
      %v80 = vmul.f32 %v32, %v78
      %v81 = vmul.f32 %v33, %v78
      %v82 = vmul.f32 %v34, %v78
      %v83 = vmul.f32 %v35, %v78
      %v84 = vmul.f32 %v36, %v78
      %v85 = vmul.f32 %v37, %v78
      %v86 = vmul.f32 %v38, %v78
      %v87 = vrot.slane %v79, 4
      %v88 = vadd.f32 %v79, %v87
      %v89 = vrot.slane %v88, 2
      %v90 = vadd.f32 %v88, %v89
      %v91 = vrot.slane %v90, 1
      %v92 = vadd.f32 %v90, %v91
      %v93 = vrot.slane %v80, 4
      %v94 = vadd.f32 %v80, %v93
      %v95 = vrot.slane %v94, 2
      %v96 = vadd.f32 %v94, %v95
      %v97 = vrot.slane %v96, 1
      %v98 = vadd.f32 %v96, %v97
      %v99 = vrot.slane %v81, 4
      %v100 = vadd.f32 %v81, %v99
      %v101 = vrot.slane %v100, 2
      %v102 = vadd.f32 %v100, %v101
      %v103 = vrot.slane %v102, 1
      %v104 = vadd.f32 %v102, %v103
      %v105 = vrot.slane %v82, 4
      %v106 = vadd.f32 %v82, %v105
      %v107 = vrot.slane %v106, 2
      %v108 = vadd.f32 %v106, %v107
      %v109 = vrot.slane %v108, 1
      %v110 = vadd.f32 %v108, %v109
      %v111 = vrot.slane %v83, 4
      %v112 = vadd.f32 %v83, %v111
      %v113 = vrot.slane %v112, 2
      %v114 = vadd.f32 %v112, %v113
      %v115 = vrot.slane %v114, 1
      %v116 = vadd.f32 %v114, %v115
      %v117 = vrot.slane %v84, 4
      %v118 = vadd.f32 %v84, %v117
      %v119 = vrot.slane %v118, 2
      %v120 = vadd.f32 %v118, %v119
      %v121 = vrot.slane %v120, 1
      %v122 = vadd.f32 %v120, %v121
      %v123 = vrot.slane %v85, 4
      %v124 = vadd.f32 %v85, %v123
      %v125 = vrot.slane %v124, 2
      %v126 = vadd.f32 %v124, %v125
      %v127 = vrot.slane %v126, 1
      %v128 = vadd.f32 %v126, %v127
      %v129 = vrot.slane %v86, 4
      %v130 = vadd.f32 %v86, %v129
      %v131 = vrot.slane %v130, 2
      %v132 = vadd.f32 %v130, %v131
      %v133 = vrot.slane %v132, 1
      %v134 = vadd.f32 %v132, %v133
      %v135 = vmul.f32 %v134, 0.14285715
      %v136 = vrcp.pop %v92
      %v137 = vmul.f32 1.0, %v136
      %v138 = vrcp.pop %v98
      %v139 = vmul.f32 1.0, %v138
      %v140 = vrcp.pop %v104
      %v141 = vmul.f32 1.0, %v140
      %v142 = vrcp.pop %v110
      %v143 = vmul.f32 1.0, %v142
      %v144 = vrcp.pop %v116
      %v145 = vmul.f32 1.0, %v144
      %v146 = vrcp.pop %v122
      %v147 = vmul.f32 1.0, %v146
      %v148 = vrcp.pop %v128
      %v149 = vmul.f32 1.0, %v148
      %v150 = vrcp.pop %v135
      %v151 = vmul.f32 1.0, %v150
      %v152 = vsub.f32 %v47, %v137
      %v153 = vsub.f32 %v48, %v139
      %v154 = vsub.f32 %v49, %v141
      %v155 = vsub.f32 %v50, %v143
      %v156 = vsub.f32 %v51, %v145
      %v157 = vsub.f32 %v52, %v147
      %v158 = vsub.f32 %v53, %v149
      %v159 = vsub.f32 %v54, %v151
      %v160 = vand.u32 2147483647, %v152
      %v161 = vand.u32 2147483647, %v153
      %v162 = vand.u32 2147483647, %v154
      %v163 = vand.u32 2147483647, %v155
      %v164 = vand.u32 2147483647, %v156
      %v165 = vand.u32 2147483647, %v157
      %v166 = vand.u32 2147483647, %v158
      %v167 = vand.u32 2147483647, %v159
      %v168 = vadd.f32 %v160, %v161
      %v169 = vadd.f32 %v168, %v162
      %v170 = vadd.f32 %v169, %v163
      %v171 = vadd.f32 %v170, %v164
      %v172 = vadd.f32 %v171, %v165
      %v173 = vadd.f32 %v172, %v166
      %v174 = vadd.f32 %v173, %v167
      %v175 = vmul.f32 %v174, %v174
      %v176 = vsub.f32 %v55, %v78
      %v177 = vand.u32 2147483647, %v176
      %v178 = vrot.slane %v177, 4
      %v179 = vadd.f32 %v177, %v178
      %v180 = vrot.slane %v179, 2
      %v181 = vadd.f32 %v179, %v180
      %v182 = vrot.slane %v181, 1
      %v183 = vadd.f32 %v181, %v182
      %v184 = vmul.f32 %v183, %v183
      %v185 = vadd.f32 %v175, %v184
      %vm186 = vcmp.lt.f32.partialorder %v46, 0.5
      %v187 = vsel %vm186, 1, 0
      %vm188 = vcmp.eq.s32.totalorder %v187, 1
      %v189 = vsel %vm188, %v137, %v47
      %v190 = vsel %vm188, %v139, %v48
      %v191 = vsel %vm188, %v141, %v49
      %v192 = vsel %vm188, %v143, %v50
      %v193 = vsel %vm188, %v145, %v51
      %v194 = vsel %vm188, %v147, %v52
      %v195 = vsel %vm188, %v149, %v53
      %v196 = vsel %vm188, %v151, %v54
      %v197 = vsel %vm188, %v78, %v55
      %vm198 = vcmp.le.f32.partialorder %v185, 0.001
      %v199 = vsel %vm198, 1, 0
      %v200 = vcvt.s32.f32 %v199
      %v201 = vmax.f32 %v46, %v200
      %v202 = vmul.f32 %v31, %v189
      %v203 = vmul.f32 %v32, %v190
      %v204 = vmul.f32 %v33, %v191
      %v205 = vmul.f32 %v34, %v192
      %v206 = vmul.f32 %v35, %v193
      %v207 = vmul.f32 %v36, %v194
      %v208 = vmul.f32 %v37, %v195
      %v209 = vmul.f32 %v38, %v196
      %v210 = vadd.f32 %v202, %v203
      %v211 = vadd.f32 %v210, %v204
      %v212 = vadd.f32 %v211, %v205
      %v213 = vadd.f32 %v212, %v206
      %v214 = vadd.f32 %v213, %v207
      %v215 = vadd.f32 %v214, %v208
      %v216 = vadd.f32 %v215, %v209
      %v217 = vrcp.pop %v216
      %v218 = vmul.f32 %v42, %v217
      %v219 = vmul.f32 %v31, %v218
      %v220 = vmul.f32 %v32, %v218
      %v221 = vmul.f32 %v33, %v218
      %v222 = vmul.f32 %v34, %v218
      %v223 = vmul.f32 %v35, %v218
      %v224 = vmul.f32 %v36, %v218
      %v225 = vmul.f32 %v37, %v218
      %v226 = vmul.f32 %v38, %v218
      %v227 = vrot.slane %v219, 4
      %v228 = vadd.f32 %v219, %v227
      %v229 = vrot.slane %v228, 2
      %v230 = vadd.f32 %v228, %v229
      %v231 = vrot.slane %v230, 1
      %v232 = vadd.f32 %v230, %v231
      %v233 = vrot.slane %v220, 4
      %v234 = vadd.f32 %v220, %v233
      %v235 = vrot.slane %v234, 2
      %v236 = vadd.f32 %v234, %v235
      %v237 = vrot.slane %v236, 1
      %v238 = vadd.f32 %v236, %v237
      %v239 = vrot.slane %v221, 4
      %v240 = vadd.f32 %v221, %v239
      %v241 = vrot.slane %v240, 2
      %v242 = vadd.f32 %v240, %v241
      %v243 = vrot.slane %v242, 1
      %v244 = vadd.f32 %v242, %v243
      %v245 = vrot.slane %v222, 4
      %v246 = vadd.f32 %v222, %v245
      %v247 = vrot.slane %v246, 2
      %v248 = vadd.f32 %v246, %v247
      %v249 = vrot.slane %v248, 1
      %v250 = vadd.f32 %v248, %v249
      %v251 = vrot.slane %v223, 4
      %v252 = vadd.f32 %v223, %v251
      %v253 = vrot.slane %v252, 2
      %v254 = vadd.f32 %v252, %v253
      %v255 = vrot.slane %v254, 1
      %v256 = vadd.f32 %v254, %v255
      %v257 = vrot.slane %v224, 4
      %v258 = vadd.f32 %v224, %v257
      %v259 = vrot.slane %v258, 2
      %v260 = vadd.f32 %v258, %v259
      %v261 = vrot.slane %v260, 1
      %v262 = vadd.f32 %v260, %v261
      %v263 = vrot.slane %v225, 4
      %v264 = vadd.f32 %v225, %v263
      %v265 = vrot.slane %v264, 2
      %v266 = vadd.f32 %v264, %v265
      %v267 = vrot.slane %v266, 1
      %v268 = vadd.f32 %v266, %v267
      %v269 = vrot.slane %v226, 4
      %v270 = vadd.f32 %v226, %v269
      %v271 = vrot.slane %v270, 2
      %v272 = vadd.f32 %v270, %v271
      %v273 = vrot.slane %v272, 1
      %v274 = vadd.f32 %v272, %v273
      %v275 = vmul.f32 %v274, 0.14285715
      %v276 = vrcp.pop %v232
      %v277 = vmul.f32 1.0, %v276
      %v278 = vrcp.pop %v238
      %v279 = vmul.f32 1.0, %v278
      %v280 = vrcp.pop %v244
      %v281 = vmul.f32 1.0, %v280
      %v282 = vrcp.pop %v250
      %v283 = vmul.f32 1.0, %v282
      %v284 = vrcp.pop %v256
      %v285 = vmul.f32 1.0, %v284
      %v286 = vrcp.pop %v262
      %v287 = vmul.f32 1.0, %v286
      %v288 = vrcp.pop %v268
      %v289 = vmul.f32 1.0, %v288
      %v290 = vrcp.pop %v275
      %v291 = vmul.f32 1.0, %v290
      %v292 = vsub.f32 %v189, %v277
      %v293 = vsub.f32 %v190, %v279
      %v294 = vsub.f32 %v191, %v281
      %v295 = vsub.f32 %v192, %v283
      %v296 = vsub.f32 %v193, %v285
      %v297 = vsub.f32 %v194, %v287
      %v298 = vsub.f32 %v195, %v289
      %v299 = vsub.f32 %v196, %v291
      %v300 = vand.u32 2147483647, %v292
      %v301 = vand.u32 2147483647, %v293
      %v302 = vand.u32 2147483647, %v294
      %v303 = vand.u32 2147483647, %v295
      %v304 = vand.u32 2147483647, %v296
      %v305 = vand.u32 2147483647, %v297
      %v306 = vand.u32 2147483647, %v298
      %v307 = vand.u32 2147483647, %v299
      %v308 = vadd.f32 %v300, %v301
      %v309 = vadd.f32 %v308, %v302
      %v310 = vadd.f32 %v309, %v303
      %v311 = vadd.f32 %v310, %v304
      %v312 = vadd.f32 %v311, %v305
      %v313 = vadd.f32 %v312, %v306
      %v314 = vadd.f32 %v313, %v307
      %v315 = vmul.f32 %v314, %v314
      %v316 = vsub.f32 %v197, %v218
      %v317 = vand.u32 2147483647, %v316
      %v318 = vrot.slane %v317, 4
      %v319 = vadd.f32 %v317, %v318
      %v320 = vrot.slane %v319, 2
      %v321 = vadd.f32 %v319, %v320
      %v322 = vrot.slane %v321, 1
      %v323 = vadd.f32 %v321, %v322
      %v324 = vmul.f32 %v323, %v323
      %v325 = vadd.f32 %v315, %v324
      %vm326 = vcmp.lt.f32.partialorder %v201, 0.5
      %v327 = vsel %vm326, 1, 0
      %vm328 = vcmp.eq.s32.totalorder %v327, 1
      %v329 = vsel %vm328, %v277, %v189
      %v330 = vsel %vm328, %v279, %v190
      %v331 = vsel %vm328, %v281, %v191
      %v332 = vsel %vm328, %v283, %v192
      %v333 = vsel %vm328, %v285, %v193
      %v334 = vsel %vm328, %v287, %v194
      %v335 = vsel %vm328, %v289, %v195
      %v336 = vsel %vm328, %v291, %v196
      %v337 = vsel %vm328, %v218, %v197
      %vm338 = vcmp.le.f32.partialorder %v325, 0.001
      %v339 = vsel %vm338, 1, 0
      %v340 = vcvt.s32.f32 %v339
      %v341 = vmax.f32 %v201, %v340
      %v342 = vmul.f32 %v31, %v329
      %v343 = vmul.f32 %v32, %v330
      %v344 = vmul.f32 %v33, %v331
      %v345 = vmul.f32 %v34, %v332
      %v346 = vmul.f32 %v35, %v333
      %v347 = vmul.f32 %v36, %v334
      %v348 = vmul.f32 %v37, %v335
      %v349 = vmul.f32 %v38, %v336
      %v350 = vadd.f32 %v342, %v343
      %v351 = vadd.f32 %v350, %v344
      %v352 = vadd.f32 %v351, %v345
      %v353 = vadd.f32 %v352, %v346
      %v354 = vadd.f32 %v353, %v347
      %v355 = vadd.f32 %v354, %v348
      %v356 = vadd.f32 %v355, %v349
      %v357 = vrcp.pop %v356
      %v358 = vmul.f32 %v42, %v357
      %v359 = vmul.f32 %v31, %v358
      %v360 = vmul.f32 %v32, %v358
      %v361 = vmul.f32 %v33, %v358
      %v362 = vmul.f32 %v34, %v358
      %v363 = vmul.f32 %v35, %v358
      %v364 = vmul.f32 %v36, %v358
      %v365 = vmul.f32 %v37, %v358
      %v366 = vmul.f32 %v38, %v358
      %v367 = vrot.slane %v359, 4
      %v368 = vadd.f32 %v359, %v367
      %v369 = vrot.slane %v368, 2
      %v370 = vadd.f32 %v368, %v369
      %v371 = vrot.slane %v370, 1
      %v372 = vadd.f32 %v370, %v371
      %v373 = vrot.slane %v360, 4
      %v374 = vadd.f32 %v360, %v373
      %v375 = vrot.slane %v374, 2
      %v376 = vadd.f32 %v374, %v375
      %v377 = vrot.slane %v376, 1
      %v378 = vadd.f32 %v376, %v377
      %v379 = vrot.slane %v361, 4
      %v380 = vadd.f32 %v361, %v379
      %v381 = vrot.slane %v380, 2
      %v382 = vadd.f32 %v380, %v381
      %v383 = vrot.slane %v382, 1
      %v384 = vadd.f32 %v382, %v383
      %v385 = vrot.slane %v362, 4
      %v386 = vadd.f32 %v362, %v385
      %v387 = vrot.slane %v386, 2
      %v388 = vadd.f32 %v386, %v387
      %v389 = vrot.slane %v388, 1
      %v390 = vadd.f32 %v388, %v389
      %v391 = vrot.slane %v363, 4
      %v392 = vadd.f32 %v363, %v391
      %v393 = vrot.slane %v392, 2
      %v394 = vadd.f32 %v392, %v393
      %v395 = vrot.slane %v394, 1
      %v396 = vadd.f32 %v394, %v395
      %v397 = vrot.slane %v364, 4
      %v398 = vadd.f32 %v364, %v397
      %v399 = vrot.slane %v398, 2
      %v400 = vadd.f32 %v398, %v399
      %v401 = vrot.slane %v400, 1
      %v402 = vadd.f32 %v400, %v401
      %v403 = vrot.slane %v365, 4
      %v404 = vadd.f32 %v365, %v403
      %v405 = vrot.slane %v404, 2
      %v406 = vadd.f32 %v404, %v405
      %v407 = vrot.slane %v406, 1
      %v408 = vadd.f32 %v406, %v407
      %v409 = vrot.slane %v366, 4
      %v410 = vadd.f32 %v366, %v409
      %v411 = vrot.slane %v410, 2
      %v412 = vadd.f32 %v410, %v411
      %v413 = vrot.slane %v412, 1
      %v414 = vadd.f32 %v412, %v413
      %v415 = vmul.f32 %v414, 0.14285715
      %v416 = vrcp.pop %v372
      %v417 = vmul.f32 1.0, %v416
      %v418 = vrcp.pop %v378
      %v419 = vmul.f32 1.0, %v418
      %v420 = vrcp.pop %v384
      %v421 = vmul.f32 1.0, %v420
      %v422 = vrcp.pop %v390
      %v423 = vmul.f32 1.0, %v422
      %v424 = vrcp.pop %v396
      %v425 = vmul.f32 1.0, %v424
      %v426 = vrcp.pop %v402
      %v427 = vmul.f32 1.0, %v426
      %v428 = vrcp.pop %v408
      %v429 = vmul.f32 1.0, %v428
      %v430 = vrcp.pop %v415
      %v431 = vmul.f32 1.0, %v430
      %v432 = vsub.f32 %v329, %v417
      %v433 = vsub.f32 %v330, %v419
      %v434 = vsub.f32 %v331, %v421
      %v435 = vsub.f32 %v332, %v423
      %v436 = vsub.f32 %v333, %v425
      %v437 = vsub.f32 %v334, %v427
      %v438 = vsub.f32 %v335, %v429
      %v439 = vsub.f32 %v336, %v431
      %v440 = vand.u32 2147483647, %v432
      %v441 = vand.u32 2147483647, %v433
      %v442 = vand.u32 2147483647, %v434
      %v443 = vand.u32 2147483647, %v435
      %v444 = vand.u32 2147483647, %v436
      %v445 = vand.u32 2147483647, %v437
      %v446 = vand.u32 2147483647, %v438
      %v447 = vand.u32 2147483647, %v439
      %v448 = vadd.f32 %v440, %v441
      %v449 = vadd.f32 %v448, %v442
      %v450 = vadd.f32 %v449, %v443
      %v451 = vadd.f32 %v450, %v444
      %v452 = vadd.f32 %v451, %v445
      %v453 = vadd.f32 %v452, %v446
      %v454 = vadd.f32 %v453, %v447
      %v455 = vmul.f32 %v454, %v454
      %v456 = vsub.f32 %v337, %v358
      %v457 = vand.u32 2147483647, %v456
      %v458 = vrot.slane %v457, 4
      %v459 = vadd.f32 %v457, %v458
      %v460 = vrot.slane %v459, 2
      %v461 = vadd.f32 %v459, %v460
      %v462 = vrot.slane %v461, 1
      %v463 = vadd.f32 %v461, %v462
      %v464 = vmul.f32 %v463, %v463
      %v465 = vadd.f32 %v455, %v464
      %vm466 = vcmp.lt.f32.partialorder %v341, 0.5
      %v467 = vsel %vm466, 1, 0
      %vm468 = vcmp.eq.s32.totalorder %v467, 1
      %v469 = vsel %vm468, %v417, %v329
      %v470 = vsel %vm468, %v419, %v330
      %v471 = vsel %vm468, %v421, %v331
      %v472 = vsel %vm468, %v423, %v332
      %v473 = vsel %vm468, %v425, %v333
      %v474 = vsel %vm468, %v427, %v334
      %v475 = vsel %vm468, %v429, %v335
      %v476 = vsel %vm468, %v431, %v336
      %v477 = vsel %vm468, %v358, %v337
      %vm478 = vcmp.le.f32.partialorder %v465, 0.001
      %v479 = vsel %vm478, 1, 0
      %v480 = vcvt.s32.f32 %v479
      %v481 = vmax.f32 %v341, %v480
      %v482 = vmul.f32 %v31, %v469
      %v483 = vmul.f32 %v32, %v470
      %v484 = vmul.f32 %v33, %v471
      %v485 = vmul.f32 %v34, %v472
      %v486 = vmul.f32 %v35, %v473
      %v487 = vmul.f32 %v36, %v474
      %v488 = vmul.f32 %v37, %v475
      %v489 = vmul.f32 %v38, %v476
      %v490 = vadd.f32 %v482, %v483
      %v491 = vadd.f32 %v490, %v484
      %v492 = vadd.f32 %v491, %v485
      %v493 = vadd.f32 %v492, %v486
      %v494 = vadd.f32 %v493, %v487
      %v495 = vadd.f32 %v494, %v488
      %v496 = vadd.f32 %v495, %v489
      %v497 = vrcp.pop %v496
      %v498 = vmul.f32 %v42, %v497
      %v499 = vmul.f32 %v31, %v498
      %v500 = vmul.f32 %v32, %v498
      %v501 = vmul.f32 %v33, %v498
      %v502 = vmul.f32 %v34, %v498
      %v503 = vmul.f32 %v35, %v498
      %v504 = vmul.f32 %v36, %v498
      %v505 = vmul.f32 %v37, %v498
      %v506 = vmul.f32 %v38, %v498
      %v507 = vrot.slane %v499, 4
      %v508 = vadd.f32 %v499, %v507
      %v509 = vrot.slane %v508, 2
      %v510 = vadd.f32 %v508, %v509
      %v511 = vrot.slane %v510, 1
      %v512 = vadd.f32 %v510, %v511
      %v513 = vrot.slane %v500, 4
      %v514 = vadd.f32 %v500, %v513
      %v515 = vrot.slane %v514, 2
      %v516 = vadd.f32 %v514, %v515
      %v517 = vrot.slane %v516, 1
      %v518 = vadd.f32 %v516, %v517
      %v519 = vrot.slane %v501, 4
      %v520 = vadd.f32 %v501, %v519
      %v521 = vrot.slane %v520, 2
      %v522 = vadd.f32 %v520, %v521
      %v523 = vrot.slane %v522, 1
      %v524 = vadd.f32 %v522, %v523
      %v525 = vrot.slane %v502, 4
      %v526 = vadd.f32 %v502, %v525
      %v527 = vrot.slane %v526, 2
      %v528 = vadd.f32 %v526, %v527
      %v529 = vrot.slane %v528, 1
      %v530 = vadd.f32 %v528, %v529
      %v531 = vrot.slane %v503, 4
      %v532 = vadd.f32 %v503, %v531
      %v533 = vrot.slane %v532, 2
      %v534 = vadd.f32 %v532, %v533
      %v535 = vrot.slane %v534, 1
      %v536 = vadd.f32 %v534, %v535
      %v537 = vrot.slane %v504, 4
      %v538 = vadd.f32 %v504, %v537
      %v539 = vrot.slane %v538, 2
      %v540 = vadd.f32 %v538, %v539
      %v541 = vrot.slane %v540, 1
      %v542 = vadd.f32 %v540, %v541
      %v543 = vrot.slane %v505, 4
      %v544 = vadd.f32 %v505, %v543
      %v545 = vrot.slane %v544, 2
      %v546 = vadd.f32 %v544, %v545
      %v547 = vrot.slane %v546, 1
      %v548 = vadd.f32 %v546, %v547
      %v549 = vrot.slane %v506, 4
      %v550 = vadd.f32 %v506, %v549
      %v551 = vrot.slane %v550, 2
      %v552 = vadd.f32 %v550, %v551
      %v553 = vrot.slane %v552, 1
      %v554 = vadd.f32 %v552, %v553
      %v555 = vmul.f32 %v554, 0.14285715
      %v556 = vrcp.pop %v512
      %v557 = vmul.f32 1.0, %v556
      %v558 = vrcp.pop %v518
      %v559 = vmul.f32 1.0, %v558
      %v560 = vrcp.pop %v524
      %v561 = vmul.f32 1.0, %v560
      %v562 = vrcp.pop %v530
      %v563 = vmul.f32 1.0, %v562
      %v564 = vrcp.pop %v536
      %v565 = vmul.f32 1.0, %v564
      %v566 = vrcp.pop %v542
      %v567 = vmul.f32 1.0, %v566
      %v568 = vrcp.pop %v548
      %v569 = vmul.f32 1.0, %v568
      %v570 = vrcp.pop %v555
      %v571 = vmul.f32 1.0, %v570
      %v572 = vsub.f32 %v469, %v557
      %v573 = vsub.f32 %v470, %v559
      %v574 = vsub.f32 %v471, %v561
      %v575 = vsub.f32 %v472, %v563
      %v576 = vsub.f32 %v473, %v565
      %v577 = vsub.f32 %v474, %v567
      %v578 = vsub.f32 %v475, %v569
      %v579 = vsub.f32 %v476, %v571
      %v580 = vand.u32 2147483647, %v572
      %v581 = vand.u32 2147483647, %v573
      %v582 = vand.u32 2147483647, %v574
      %v583 = vand.u32 2147483647, %v575
      %v584 = vand.u32 2147483647, %v576
      %v585 = vand.u32 2147483647, %v577
      %v586 = vand.u32 2147483647, %v578
      %v587 = vand.u32 2147483647, %v579
      %v588 = vadd.f32 %v580, %v581
      %v589 = vadd.f32 %v588, %v582
      %v590 = vadd.f32 %v589, %v583
      %v591 = vadd.f32 %v590, %v584
      %v592 = vadd.f32 %v591, %v585
      %v593 = vadd.f32 %v592, %v586
      %v594 = vadd.f32 %v593, %v587
      %v595 = vmul.f32 %v594, %v594
      %v596 = vsub.f32 %v477, %v498
      %v597 = vand.u32 2147483647, %v596
      %v598 = vrot.slane %v597, 4
      %v599 = vadd.f32 %v597, %v598
      %v600 = vrot.slane %v599, 2
      %v601 = vadd.f32 %v599, %v600
      %v602 = vrot.slane %v601, 1
      %v603 = vadd.f32 %v601, %v602
      %v604 = vmul.f32 %v603, %v603
      %v605 = vadd.f32 %v595, %v604
      %vm606 = vcmp.lt.f32.partialorder %v481, 0.5
      %v607 = vsel %vm606, 1, 0
      %vm608 = vcmp.eq.s32.totalorder %v607, 1
      %v609 = vsel %vm608, %v557, %v469
      %v610 = vsel %vm608, %v559, %v470
      %v611 = vsel %vm608, %v561, %v471
      %v612 = vsel %vm608, %v563, %v472
      %v613 = vsel %vm608, %v565, %v473
      %v614 = vsel %vm608, %v567, %v474
      %v615 = vsel %vm608, %v569, %v475
      %v616 = vsel %vm608, %v571, %v476
      %v617 = vsel %vm608, %v498, %v477
      %vm618 = vcmp.le.f32.partialorder %v605, 0.001
      %v619 = vsel %vm618, 1, 0
      %v620 = vcvt.s32.f32 %v619
      %v621 = vmax.f32 %v481, %v620
      %v622 = vmul.f32 %v31, %v609
      %v623 = vmul.f32 %v32, %v610
      %v624 = vmul.f32 %v33, %v611
      %v625 = vmul.f32 %v34, %v612
      %v626 = vmul.f32 %v35, %v613
      %v627 = vmul.f32 %v36, %v614
      %v628 = vmul.f32 %v37, %v615
      %v629 = vmul.f32 %v38, %v616
      %v630 = vadd.f32 %v622, %v623
      %v631 = vadd.f32 %v630, %v624
      %v632 = vadd.f32 %v631, %v625
      %v633 = vadd.f32 %v632, %v626
      %v634 = vadd.f32 %v633, %v627
      %v635 = vadd.f32 %v634, %v628
      %v636 = vadd.f32 %v635, %v629
      %v637 = vrcp.pop %v636
      %v638 = vmul.f32 %v42, %v637
      %v639 = vmul.f32 %v31, %v638
      %v640 = vmul.f32 %v32, %v638
      %v641 = vmul.f32 %v33, %v638
      %v642 = vmul.f32 %v34, %v638
      %v643 = vmul.f32 %v35, %v638
      %v644 = vmul.f32 %v36, %v638
      %v645 = vmul.f32 %v37, %v638
      %v646 = vmul.f32 %v38, %v638
      %v647 = vrot.slane %v639, 4
      %v648 = vadd.f32 %v639, %v647
      %v649 = vrot.slane %v648, 2
      %v650 = vadd.f32 %v648, %v649
      %v651 = vrot.slane %v650, 1
      %v652 = vadd.f32 %v650, %v651
      %v653 = vrot.slane %v640, 4
      %v654 = vadd.f32 %v640, %v653
      %v655 = vrot.slane %v654, 2
      %v656 = vadd.f32 %v654, %v655
      %v657 = vrot.slane %v656, 1
      %v658 = vadd.f32 %v656, %v657
      %v659 = vrot.slane %v641, 4
      %v660 = vadd.f32 %v641, %v659
      %v661 = vrot.slane %v660, 2
      %v662 = vadd.f32 %v660, %v661
      %v663 = vrot.slane %v662, 1
      %v664 = vadd.f32 %v662, %v663
      %v665 = vrot.slane %v642, 4
      %v666 = vadd.f32 %v642, %v665
      %v667 = vrot.slane %v666, 2
      %v668 = vadd.f32 %v666, %v667
      %v669 = vrot.slane %v668, 1
      %v670 = vadd.f32 %v668, %v669
      %v671 = vrot.slane %v643, 4
      %v672 = vadd.f32 %v643, %v671
      %v673 = vrot.slane %v672, 2
      %v674 = vadd.f32 %v672, %v673
      %v675 = vrot.slane %v674, 1
      %v676 = vadd.f32 %v674, %v675
      %v677 = vrot.slane %v644, 4
      %v678 = vadd.f32 %v644, %v677
      %v679 = vrot.slane %v678, 2
      %v680 = vadd.f32 %v678, %v679
      %v681 = vrot.slane %v680, 1
      %v682 = vadd.f32 %v680, %v681
      %v683 = vrot.slane %v645, 4
      %v684 = vadd.f32 %v645, %v683
      %v685 = vrot.slane %v684, 2
      %v686 = vadd.f32 %v684, %v685
      %v687 = vrot.slane %v686, 1
      %v688 = vadd.f32 %v686, %v687
      %v689 = vrot.slane %v646, 4
      %v690 = vadd.f32 %v646, %v689
      %v691 = vrot.slane %v690, 2
      %v692 = vadd.f32 %v690, %v691
      %v693 = vrot.slane %v692, 1
      %v694 = vadd.f32 %v692, %v693
      %v695 = vmul.f32 %v694, 0.14285715
      %v696 = vrcp.pop %v652
      %v697 = vmul.f32 1.0, %v696
      %v698 = vrcp.pop %v658
      %v699 = vmul.f32 1.0, %v698
      %v700 = vrcp.pop %v664
      %v701 = vmul.f32 1.0, %v700
      %v702 = vrcp.pop %v670
      %v703 = vmul.f32 1.0, %v702
      %v704 = vrcp.pop %v676
      %v705 = vmul.f32 1.0, %v704
      %v706 = vrcp.pop %v682
      %v707 = vmul.f32 1.0, %v706
      %v708 = vrcp.pop %v688
      %v709 = vmul.f32 1.0, %v708
      %v710 = vrcp.pop %v695
      %v711 = vmul.f32 1.0, %v710
      %v712 = vsub.f32 %v609, %v697
      %v713 = vsub.f32 %v610, %v699
      %v714 = vsub.f32 %v611, %v701
      %v715 = vsub.f32 %v612, %v703
      %v716 = vsub.f32 %v613, %v705
      %v717 = vsub.f32 %v614, %v707
      %v718 = vsub.f32 %v615, %v709
      %v719 = vsub.f32 %v616, %v711
      %v720 = vand.u32 2147483647, %v712
      %v721 = vand.u32 2147483647, %v713
      %v722 = vand.u32 2147483647, %v714
      %v723 = vand.u32 2147483647, %v715
      %v724 = vand.u32 2147483647, %v716
      %v725 = vand.u32 2147483647, %v717
      %v726 = vand.u32 2147483647, %v718
      %v727 = vand.u32 2147483647, %v719
      %v728 = vadd.f32 %v720, %v721
      %v729 = vadd.f32 %v728, %v722
      %v730 = vadd.f32 %v729, %v723
      %v731 = vadd.f32 %v730, %v724
      %v732 = vadd.f32 %v731, %v725
      %v733 = vadd.f32 %v732, %v726
      %v734 = vadd.f32 %v733, %v727
      %v735 = vmul.f32 %v734, %v734
      %v736 = vsub.f32 %v617, %v638
      %v737 = vand.u32 2147483647, %v736
      %v738 = vrot.slane %v737, 4
      %v739 = vadd.f32 %v737, %v738
      %v740 = vrot.slane %v739, 2
      %v741 = vadd.f32 %v739, %v740
      %v742 = vrot.slane %v741, 1
      %v743 = vadd.f32 %v741, %v742
      %v744 = vmul.f32 %v743, %v743
      %v745 = vadd.f32 %v735, %v744
      %vm746 = vcmp.lt.f32.partialorder %v621, 0.5
      %v747 = vsel %vm746, 1, 0
      %vm748 = vcmp.eq.s32.totalorder %v747, 1
      %v749 = vsel %vm748, %v697, %v609
      %v750 = vsel %vm748, %v699, %v610
      %v751 = vsel %vm748, %v701, %v611
      %v752 = vsel %vm748, %v703, %v612
      %v753 = vsel %vm748, %v705, %v613
      %v754 = vsel %vm748, %v707, %v614
      %v755 = vsel %vm748, %v709, %v615
      %v756 = vsel %vm748, %v711, %v616
      %v757 = vsel %vm748, %v638, %v617
      %vm758 = vcmp.le.f32.partialorder %v745, 0.001
      %v759 = vsel %vm758, 1, 0
      %v760 = vcvt.s32.f32 %v759
      %v761 = vmax.f32 %v621, %v760
      %v762 = vmul.f32 %v31, %v749
      %v763 = vmul.f32 %v32, %v750
      %v764 = vmul.f32 %v33, %v751
      %v765 = vmul.f32 %v34, %v752
      %v766 = vmul.f32 %v35, %v753
      %v767 = vmul.f32 %v36, %v754
      %v768 = vmul.f32 %v37, %v755
      %v769 = vmul.f32 %v38, %v756
      %v770 = vadd.f32 %v762, %v763
      %v771 = vadd.f32 %v770, %v764
      %v772 = vadd.f32 %v771, %v765
      %v773 = vadd.f32 %v772, %v766
      %v774 = vadd.f32 %v773, %v767
      %v775 = vadd.f32 %v774, %v768
      %v776 = vadd.f32 %v775, %v769
      %v777 = vrcp.pop %v776
      %v778 = vmul.f32 %v42, %v777
      %v779 = vmul.f32 %v31, %v778
      %v780 = vmul.f32 %v32, %v778
      %v781 = vmul.f32 %v33, %v778
      %v782 = vmul.f32 %v34, %v778
      %v783 = vmul.f32 %v35, %v778
      %v784 = vmul.f32 %v36, %v778
      %v785 = vmul.f32 %v37, %v778
      %v786 = vmul.f32 %v38, %v778
      %v787 = vrot.slane %v779, 4
      %v788 = vadd.f32 %v779, %v787
      %v789 = vrot.slane %v788, 2
      %v790 = vadd.f32 %v788, %v789
      %v791 = vrot.slane %v790, 1
      %v792 = vadd.f32 %v790, %v791
      %v793 = vrot.slane %v780, 4
      %v794 = vadd.f32 %v780, %v793
      %v795 = vrot.slane %v794, 2
      %v796 = vadd.f32 %v794, %v795
      %v797 = vrot.slane %v796, 1
      %v798 = vadd.f32 %v796, %v797
      %v799 = vrot.slane %v781, 4
      %v800 = vadd.f32 %v781, %v799
      %v801 = vrot.slane %v800, 2
      %v802 = vadd.f32 %v800, %v801
      %v803 = vrot.slane %v802, 1
      %v804 = vadd.f32 %v802, %v803
      %v805 = vrot.slane %v782, 4
      %v806 = vadd.f32 %v782, %v805
      %v807 = vrot.slane %v806, 2
      %v808 = vadd.f32 %v806, %v807
      %v809 = vrot.slane %v808, 1
      %v810 = vadd.f32 %v808, %v809
      %v811 = vrot.slane %v783, 4
      %v812 = vadd.f32 %v783, %v811
      %v813 = vrot.slane %v812, 2
      %v814 = vadd.f32 %v812, %v813
      %v815 = vrot.slane %v814, 1
      %v816 = vadd.f32 %v814, %v815
      %v817 = vrot.slane %v784, 4
      %v818 = vadd.f32 %v784, %v817
      %v819 = vrot.slane %v818, 2
      %v820 = vadd.f32 %v818, %v819
      %v821 = vrot.slane %v820, 1
      %v822 = vadd.f32 %v820, %v821
      %v823 = vrot.slane %v785, 4
      %v824 = vadd.f32 %v785, %v823
      %v825 = vrot.slane %v824, 2
      %v826 = vadd.f32 %v824, %v825
      %v827 = vrot.slane %v826, 1
      %v828 = vadd.f32 %v826, %v827
      %v829 = vrot.slane %v786, 4
      %v830 = vadd.f32 %v786, %v829
      %v831 = vrot.slane %v830, 2
      %v832 = vadd.f32 %v830, %v831
      %v833 = vrot.slane %v832, 1
      %v834 = vadd.f32 %v832, %v833
      %v835 = vmul.f32 %v834, 0.14285715
      %v836 = vrcp.pop %v792
      %v837 = vmul.f32 1.0, %v836
      %v838 = vrcp.pop %v798
      %v839 = vmul.f32 1.0, %v838
      %v840 = vrcp.pop %v804
      %v841 = vmul.f32 1.0, %v840
      %v842 = vrcp.pop %v810
      %v843 = vmul.f32 1.0, %v842
      %v844 = vrcp.pop %v816
      %v845 = vmul.f32 1.0, %v844
      %v846 = vrcp.pop %v822
      %v847 = vmul.f32 1.0, %v846
      %v848 = vrcp.pop %v828
      %v849 = vmul.f32 1.0, %v848
      %v850 = vrcp.pop %v835
      %v851 = vmul.f32 1.0, %v850
      %v852 = vsub.f32 %v749, %v837
      %v853 = vsub.f32 %v750, %v839
      %v854 = vsub.f32 %v751, %v841
      %v855 = vsub.f32 %v752, %v843
      %v856 = vsub.f32 %v753, %v845
      %v857 = vsub.f32 %v754, %v847
      %v858 = vsub.f32 %v755, %v849
      %v859 = vsub.f32 %v756, %v851
      %v860 = vand.u32 2147483647, %v852
      %v861 = vand.u32 2147483647, %v853
      %v862 = vand.u32 2147483647, %v854
      %v863 = vand.u32 2147483647, %v855
      %v864 = vand.u32 2147483647, %v856
      %v865 = vand.u32 2147483647, %v857
      %v866 = vand.u32 2147483647, %v858
      %v867 = vand.u32 2147483647, %v859
      %v868 = vadd.f32 %v860, %v861
      %v869 = vadd.f32 %v868, %v862
      %v870 = vadd.f32 %v869, %v863
      %v871 = vadd.f32 %v870, %v864
      %v872 = vadd.f32 %v871, %v865
      %v873 = vadd.f32 %v872, %v866
      %v874 = vadd.f32 %v873, %v867
      %v875 = vmul.f32 %v874, %v874
      %v876 = vsub.f32 %v757, %v778
      %v877 = vand.u32 2147483647, %v876
      %v878 = vrot.slane %v877, 4
      %v879 = vadd.f32 %v877, %v878
      %v880 = vrot.slane %v879, 2
      %v881 = vadd.f32 %v879, %v880
      %v882 = vrot.slane %v881, 1
      %v883 = vadd.f32 %v881, %v882
      %v884 = vmul.f32 %v883, %v883
      %v885 = vadd.f32 %v875, %v884
      %vm886 = vcmp.lt.f32.partialorder %v761, 0.5
      %v887 = vsel %vm886, 1, 0
      %vm888 = vcmp.eq.s32.totalorder %v887, 1
      %v889 = vsel %vm888, %v837, %v749
      %v890 = vsel %vm888, %v839, %v750
      %v891 = vsel %vm888, %v841, %v751
      %v892 = vsel %vm888, %v843, %v752
      %v893 = vsel %vm888, %v845, %v753
      %v894 = vsel %vm888, %v847, %v754
      %v895 = vsel %vm888, %v849, %v755
      %v896 = vsel %vm888, %v851, %v756
      %v897 = vsel %vm888, %v778, %v757
      %vm898 = vcmp.le.f32.partialorder %v885, 0.001
      %v899 = vsel %vm898, 1, 0
      %v900 = vcvt.s32.f32 %v899
      %v901 = vmax.f32 %v761, %v900
      %v902 = vmul.f32 %v31, %v889
      %v903 = vmul.f32 %v32, %v890
      %v904 = vmul.f32 %v33, %v891
      %v905 = vmul.f32 %v34, %v892
      %v906 = vmul.f32 %v35, %v893
      %v907 = vmul.f32 %v36, %v894
      %v908 = vmul.f32 %v37, %v895
      %v909 = vmul.f32 %v38, %v896
      %v910 = vadd.f32 %v902, %v903
      %v911 = vadd.f32 %v910, %v904
      %v912 = vadd.f32 %v911, %v905
      %v913 = vadd.f32 %v912, %v906
      %v914 = vadd.f32 %v913, %v907
      %v915 = vadd.f32 %v914, %v908
      %v916 = vadd.f32 %v915, %v909
      %v917 = vrcp.pop %v916
      %v918 = vmul.f32 %v42, %v917
      %v919 = vmul.f32 %v31, %v918
      %v920 = vmul.f32 %v32, %v918
      %v921 = vmul.f32 %v33, %v918
      %v922 = vmul.f32 %v34, %v918
      %v923 = vmul.f32 %v35, %v918
      %v924 = vmul.f32 %v36, %v918
      %v925 = vmul.f32 %v37, %v918
      %v926 = vmul.f32 %v38, %v918
      %v927 = vrot.slane %v919, 4
      %v928 = vadd.f32 %v919, %v927
      %v929 = vrot.slane %v928, 2
      %v930 = vadd.f32 %v928, %v929
      %v931 = vrot.slane %v930, 1
      %v932 = vadd.f32 %v930, %v931
      %v933 = vrot.slane %v920, 4
      %v934 = vadd.f32 %v920, %v933
      %v935 = vrot.slane %v934, 2
      %v936 = vadd.f32 %v934, %v935
      %v937 = vrot.slane %v936, 1
      %v938 = vadd.f32 %v936, %v937
      %v939 = vrot.slane %v921, 4
      %v940 = vadd.f32 %v921, %v939
      %v941 = vrot.slane %v940, 2
      %v942 = vadd.f32 %v940, %v941
      %v943 = vrot.slane %v942, 1
      %v944 = vadd.f32 %v942, %v943
      %v945 = vrot.slane %v922, 4
      %v946 = vadd.f32 %v922, %v945
      %v947 = vrot.slane %v946, 2
      %v948 = vadd.f32 %v946, %v947
      %v949 = vrot.slane %v948, 1
      %v950 = vadd.f32 %v948, %v949
      %v951 = vrot.slane %v923, 4
      %v952 = vadd.f32 %v923, %v951
      %v953 = vrot.slane %v952, 2
      %v954 = vadd.f32 %v952, %v953
      %v955 = vrot.slane %v954, 1
      %v956 = vadd.f32 %v954, %v955
      %v957 = vrot.slane %v924, 4
      %v958 = vadd.f32 %v924, %v957
      %v959 = vrot.slane %v958, 2
      %v960 = vadd.f32 %v958, %v959
      %v961 = vrot.slane %v960, 1
      %v962 = vadd.f32 %v960, %v961
      %v963 = vrot.slane %v925, 4
      %v964 = vadd.f32 %v925, %v963
      %v965 = vrot.slane %v964, 2
      %v966 = vadd.f32 %v964, %v965
      %v967 = vrot.slane %v966, 1
      %v968 = vadd.f32 %v966, %v967
      %v969 = vrot.slane %v926, 4
      %v970 = vadd.f32 %v926, %v969
      %v971 = vrot.slane %v970, 2
      %v972 = vadd.f32 %v970, %v971
      %v973 = vrot.slane %v972, 1
      %v974 = vadd.f32 %v972, %v973
      %v975 = vmul.f32 %v974, 0.14285715
      %v976 = vrcp.pop %v932
      %v977 = vmul.f32 1.0, %v976
      %v978 = vrcp.pop %v938
      %v979 = vmul.f32 1.0, %v978
      %v980 = vrcp.pop %v944
      %v981 = vmul.f32 1.0, %v980
      %v982 = vrcp.pop %v950
      %v983 = vmul.f32 1.0, %v982
      %v984 = vrcp.pop %v956
      %v985 = vmul.f32 1.0, %v984
      %v986 = vrcp.pop %v962
      %v987 = vmul.f32 1.0, %v986
      %v988 = vrcp.pop %v968
      %v989 = vmul.f32 1.0, %v988
      %v990 = vrcp.pop %v975
      %v991 = vmul.f32 1.0, %v990
      %v992 = vsub.f32 %v889, %v977
      %v993 = vsub.f32 %v890, %v979
      %v994 = vsub.f32 %v891, %v981
      %v995 = vsub.f32 %v892, %v983
      %v996 = vsub.f32 %v893, %v985
      %v997 = vsub.f32 %v894, %v987
      %v998 = vsub.f32 %v895, %v989
      %v999 = vsub.f32 %v896, %v991
      %v1000 = vand.u32 2147483647, %v992
      %v1001 = vand.u32 2147483647, %v993
      %v1002 = vand.u32 2147483647, %v994
      %v1003 = vand.u32 2147483647, %v995
      %v1004 = vand.u32 2147483647, %v996
      %v1005 = vand.u32 2147483647, %v997
      %v1006 = vand.u32 2147483647, %v998
      %v1007 = vand.u32 2147483647, %v999
      %v1008 = vadd.f32 %v1000, %v1001
      %v1009 = vadd.f32 %v1008, %v1002
      %v1010 = vadd.f32 %v1009, %v1003
      %v1011 = vadd.f32 %v1010, %v1004
      %v1012 = vadd.f32 %v1011, %v1005
      %v1013 = vadd.f32 %v1012, %v1006
      %v1014 = vadd.f32 %v1013, %v1007
      %v1015 = vmul.f32 %v1014, %v1014
      %v1016 = vsub.f32 %v897, %v918
      %v1017 = vand.u32 2147483647, %v1016
      %v1018 = vrot.slane %v1017, 4
      %v1019 = vadd.f32 %v1017, %v1018
      %v1020 = vrot.slane %v1019, 2
      %v1021 = vadd.f32 %v1019, %v1020
      %v1022 = vrot.slane %v1021, 1
      %v1023 = vadd.f32 %v1021, %v1022
      %v1024 = vmul.f32 %v1023, %v1023
      %v1025 = vadd.f32 %v1015, %v1024
      %vm1026 = vcmp.lt.f32.partialorder %v901, 0.5
      %v1027 = vsel %vm1026, 1, 0
      %vm1028 = vcmp.eq.s32.totalorder %v1027, 1
      %v1029 = vsel %vm1028, %v977, %v889
      %v1030 = vsel %vm1028, %v979, %v890
      %v1031 = vsel %vm1028, %v981, %v891
      %v1032 = vsel %vm1028, %v983, %v892
      %v1033 = vsel %vm1028, %v985, %v893
      %v1034 = vsel %vm1028, %v987, %v894
      %v1035 = vsel %vm1028, %v989, %v895
      %v1036 = vsel %vm1028, %v991, %v896
      %v1037 = vsel %vm1028, %v918, %v897
      %vm1038 = vcmp.le.f32.partialorder %v1025, 0.001
      %v1039 = vsel %vm1038, 1, 0
      %v1040 = vcvt.s32.f32 %v1039
      %v1041 = vmax.f32 %v901, %v1040
      %v1042 = vmul.f32 %v31, %v1029
      %v1043 = vmul.f32 %v32, %v1030
      %v1044 = vmul.f32 %v33, %v1031
      %v1045 = vmul.f32 %v34, %v1032
      %v1046 = vmul.f32 %v35, %v1033
      %v1047 = vmul.f32 %v36, %v1034
      %v1048 = vmul.f32 %v37, %v1035
      %v1049 = vmul.f32 %v38, %v1036
      %v1050 = vadd.f32 %v1042, %v1043
      %v1051 = vadd.f32 %v1050, %v1044
      %v1052 = vadd.f32 %v1051, %v1045
      %v1053 = vadd.f32 %v1052, %v1046
      %v1054 = vadd.f32 %v1053, %v1047
      %v1055 = vadd.f32 %v1054, %v1048
      %v1056 = vadd.f32 %v1055, %v1049
      %v1057 = vrcp.pop %v1056
      %v1058 = vmul.f32 %v42, %v1057
      %v1059 = vmul.f32 %v31, %v1058
      %v1060 = vmul.f32 %v32, %v1058
      %v1061 = vmul.f32 %v33, %v1058
      %v1062 = vmul.f32 %v34, %v1058
      %v1063 = vmul.f32 %v35, %v1058
      %v1064 = vmul.f32 %v36, %v1058
      %v1065 = vmul.f32 %v37, %v1058
      %v1066 = vmul.f32 %v38, %v1058
      %v1067 = vrot.slane %v1059, 4
      %v1068 = vadd.f32 %v1059, %v1067
      %v1069 = vrot.slane %v1068, 2
      %v1070 = vadd.f32 %v1068, %v1069
      %v1071 = vrot.slane %v1070, 1
      %v1072 = vadd.f32 %v1070, %v1071
      %v1073 = vrot.slane %v1060, 4
      %v1074 = vadd.f32 %v1060, %v1073
      %v1075 = vrot.slane %v1074, 2
      %v1076 = vadd.f32 %v1074, %v1075
      %v1077 = vrot.slane %v1076, 1
      %v1078 = vadd.f32 %v1076, %v1077
      %v1079 = vrot.slane %v1061, 4
      %v1080 = vadd.f32 %v1061, %v1079
      %v1081 = vrot.slane %v1080, 2
      %v1082 = vadd.f32 %v1080, %v1081
      %v1083 = vrot.slane %v1082, 1
      %v1084 = vadd.f32 %v1082, %v1083
      %v1085 = vrot.slane %v1062, 4
      %v1086 = vadd.f32 %v1062, %v1085
      %v1087 = vrot.slane %v1086, 2
      %v1088 = vadd.f32 %v1086, %v1087
      %v1089 = vrot.slane %v1088, 1
      %v1090 = vadd.f32 %v1088, %v1089
      %v1091 = vrot.slane %v1063, 4
      %v1092 = vadd.f32 %v1063, %v1091
      %v1093 = vrot.slane %v1092, 2
      %v1094 = vadd.f32 %v1092, %v1093
      %v1095 = vrot.slane %v1094, 1
      %v1096 = vadd.f32 %v1094, %v1095
      %v1097 = vrot.slane %v1064, 4
      %v1098 = vadd.f32 %v1064, %v1097
      %v1099 = vrot.slane %v1098, 2
      %v1100 = vadd.f32 %v1098, %v1099
      %v1101 = vrot.slane %v1100, 1
      %v1102 = vadd.f32 %v1100, %v1101
      %v1103 = vrot.slane %v1065, 4
      %v1104 = vadd.f32 %v1065, %v1103
      %v1105 = vrot.slane %v1104, 2
      %v1106 = vadd.f32 %v1104, %v1105
      %v1107 = vrot.slane %v1106, 1
      %v1108 = vadd.f32 %v1106, %v1107
      %v1109 = vrot.slane %v1066, 4
      %v1110 = vadd.f32 %v1066, %v1109
      %v1111 = vrot.slane %v1110, 2
      %v1112 = vadd.f32 %v1110, %v1111
      %v1113 = vrot.slane %v1112, 1
      %v1114 = vadd.f32 %v1112, %v1113
      %v1115 = vmul.f32 %v1114, 0.14285715
      %v1116 = vrcp.pop %v1072
      %v1117 = vmul.f32 1.0, %v1116
      %v1118 = vrcp.pop %v1078
      %v1119 = vmul.f32 1.0, %v1118
      %v1120 = vrcp.pop %v1084
      %v1121 = vmul.f32 1.0, %v1120
      %v1122 = vrcp.pop %v1090
      %v1123 = vmul.f32 1.0, %v1122
      %v1124 = vrcp.pop %v1096
      %v1125 = vmul.f32 1.0, %v1124
      %v1126 = vrcp.pop %v1102
      %v1127 = vmul.f32 1.0, %v1126
      %v1128 = vrcp.pop %v1108
      %v1129 = vmul.f32 1.0, %v1128
      %v1130 = vrcp.pop %v1115
      %v1131 = vmul.f32 1.0, %v1130
      %v1132 = vsub.f32 %v1029, %v1117
      %v1133 = vsub.f32 %v1030, %v1119
      %v1134 = vsub.f32 %v1031, %v1121
      %v1135 = vsub.f32 %v1032, %v1123
      %v1136 = vsub.f32 %v1033, %v1125
      %v1137 = vsub.f32 %v1034, %v1127
      %v1138 = vsub.f32 %v1035, %v1129
      %v1139 = vsub.f32 %v1036, %v1131
      %v1140 = vand.u32 2147483647, %v1132
      %v1141 = vand.u32 2147483647, %v1133
      %v1142 = vand.u32 2147483647, %v1134
      %v1143 = vand.u32 2147483647, %v1135
      %v1144 = vand.u32 2147483647, %v1136
      %v1145 = vand.u32 2147483647, %v1137
      %v1146 = vand.u32 2147483647, %v1138
      %v1147 = vand.u32 2147483647, %v1139
      %v1148 = vadd.f32 %v1140, %v1141
      %v1149 = vadd.f32 %v1148, %v1142
      %v1150 = vadd.f32 %v1149, %v1143
      %v1151 = vadd.f32 %v1150, %v1144
      %v1152 = vadd.f32 %v1151, %v1145
      %v1153 = vadd.f32 %v1152, %v1146
      %v1154 = vadd.f32 %v1153, %v1147
      %v1155 = vmul.f32 %v1154, %v1154
      %v1156 = vsub.f32 %v1037, %v1058
      %v1157 = vand.u32 2147483647, %v1156
      %v1158 = vrot.slane %v1157, 4
      %v1159 = vadd.f32 %v1157, %v1158
      %v1160 = vrot.slane %v1159, 2
      %v1161 = vadd.f32 %v1159, %v1160
      %v1162 = vrot.slane %v1161, 1
      %v1163 = vadd.f32 %v1161, %v1162
      %v1164 = vmul.f32 %v1163, %v1163
      %v1165 = vadd.f32 %v1155, %v1164
      %vm1166 = vcmp.lt.f32.partialorder %v1041, 0.5
      %v1167 = vsel %vm1166, 1, 0
      %vm1168 = vcmp.eq.s32.totalorder %v1167, 1
      %v1169 = vsel %vm1168, %v1117, %v1029
      %v1170 = vsel %vm1168, %v1119, %v1030
      %v1171 = vsel %vm1168, %v1121, %v1031
      %v1172 = vsel %vm1168, %v1123, %v1032
      %v1173 = vsel %vm1168, %v1125, %v1033
      %v1174 = vsel %vm1168, %v1127, %v1034
      %v1175 = vsel %vm1168, %v1129, %v1035
      %v1176 = vsel %vm1168, %v1131, %v1036
      %v1177 = vsel %vm1168, %v1058, %v1037
      %vm1178 = vcmp.le.f32.partialorder %v1165, 0.001
      %v1179 = vsel %vm1178, 1, 0
      %v1180 = vcvt.s32.f32 %v1179
      %v1181 = vmax.f32 %v1041, %v1180
      %v1182 = vmul.f32 %v31, %v1169
      %v1183 = vmul.f32 %v32, %v1170
      %v1184 = vmul.f32 %v33, %v1171
      %v1185 = vmul.f32 %v34, %v1172
      %v1186 = vmul.f32 %v35, %v1173
      %v1187 = vmul.f32 %v36, %v1174
      %v1188 = vmul.f32 %v37, %v1175
      %v1189 = vmul.f32 %v38, %v1176
      %v1190 = vadd.f32 %v1182, %v1183
      %v1191 = vadd.f32 %v1190, %v1184
      %v1192 = vadd.f32 %v1191, %v1185
      %v1193 = vadd.f32 %v1192, %v1186
      %v1194 = vadd.f32 %v1193, %v1187
      %v1195 = vadd.f32 %v1194, %v1188
      %v1196 = vadd.f32 %v1195, %v1189
      %v1197 = vrcp.pop %v1196
      %v1198 = vmul.f32 %v42, %v1197
      %v1199 = vmul.f32 %v31, %v1198
      %v1200 = vmul.f32 %v32, %v1198
      %v1201 = vmul.f32 %v33, %v1198
      %v1202 = vmul.f32 %v34, %v1198
      %v1203 = vmul.f32 %v35, %v1198
      %v1204 = vmul.f32 %v36, %v1198
      %v1205 = vmul.f32 %v37, %v1198
      %v1206 = vmul.f32 %v38, %v1198
      %v1207 = vrot.slane %v1199, 4
      %v1208 = vadd.f32 %v1199, %v1207
      %v1209 = vrot.slane %v1208, 2
      %v1210 = vadd.f32 %v1208, %v1209
      %v1211 = vrot.slane %v1210, 1
      %v1212 = vadd.f32 %v1210, %v1211
      %v1213 = vrot.slane %v1200, 4
      %v1214 = vadd.f32 %v1200, %v1213
      %v1215 = vrot.slane %v1214, 2
      %v1216 = vadd.f32 %v1214, %v1215
      %v1217 = vrot.slane %v1216, 1
      %v1218 = vadd.f32 %v1216, %v1217
      %v1219 = vrot.slane %v1201, 4
      %v1220 = vadd.f32 %v1201, %v1219
      %v1221 = vrot.slane %v1220, 2
      %v1222 = vadd.f32 %v1220, %v1221
      %v1223 = vrot.slane %v1222, 1
      %v1224 = vadd.f32 %v1222, %v1223
      %v1225 = vrot.slane %v1202, 4
      %v1226 = vadd.f32 %v1202, %v1225
      %v1227 = vrot.slane %v1226, 2
      %v1228 = vadd.f32 %v1226, %v1227
      %v1229 = vrot.slane %v1228, 1
      %v1230 = vadd.f32 %v1228, %v1229
      %v1231 = vrot.slane %v1203, 4
      %v1232 = vadd.f32 %v1203, %v1231
      %v1233 = vrot.slane %v1232, 2
      %v1234 = vadd.f32 %v1232, %v1233
      %v1235 = vrot.slane %v1234, 1
      %v1236 = vadd.f32 %v1234, %v1235
      %v1237 = vrot.slane %v1204, 4
      %v1238 = vadd.f32 %v1204, %v1237
      %v1239 = vrot.slane %v1238, 2
      %v1240 = vadd.f32 %v1238, %v1239
      %v1241 = vrot.slane %v1240, 1
      %v1242 = vadd.f32 %v1240, %v1241
      %v1243 = vrot.slane %v1205, 4
      %v1244 = vadd.f32 %v1205, %v1243
      %v1245 = vrot.slane %v1244, 2
      %v1246 = vadd.f32 %v1244, %v1245
      %v1247 = vrot.slane %v1246, 1
      %v1248 = vadd.f32 %v1246, %v1247
      %v1249 = vrot.slane %v1206, 4
      %v1250 = vadd.f32 %v1206, %v1249
      %v1251 = vrot.slane %v1250, 2
      %v1252 = vadd.f32 %v1250, %v1251
      %v1253 = vrot.slane %v1252, 1
      %v1254 = vadd.f32 %v1252, %v1253
      %v1255 = vmul.f32 %v1254, 0.14285715
      %v1256 = vrcp.pop %v1212
      %v1257 = vmul.f32 1.0, %v1256
      %v1258 = vrcp.pop %v1218
      %v1259 = vmul.f32 1.0, %v1258
      %v1260 = vrcp.pop %v1224
      %v1261 = vmul.f32 1.0, %v1260
      %v1262 = vrcp.pop %v1230
      %v1263 = vmul.f32 1.0, %v1262
      %v1264 = vrcp.pop %v1236
      %v1265 = vmul.f32 1.0, %v1264
      %v1266 = vrcp.pop %v1242
      %v1267 = vmul.f32 1.0, %v1266
      %v1268 = vrcp.pop %v1248
      %v1269 = vmul.f32 1.0, %v1268
      %v1270 = vrcp.pop %v1255
      %v1271 = vmul.f32 1.0, %v1270
      %v1272 = vsub.f32 %v1169, %v1257
      %v1273 = vsub.f32 %v1170, %v1259
      %v1274 = vsub.f32 %v1171, %v1261
      %v1275 = vsub.f32 %v1172, %v1263
      %v1276 = vsub.f32 %v1173, %v1265
      %v1277 = vsub.f32 %v1174, %v1267
      %v1278 = vsub.f32 %v1175, %v1269
      %v1279 = vsub.f32 %v1176, %v1271
      %v1280 = vand.u32 2147483647, %v1272
      %v1281 = vand.u32 2147483647, %v1273
      %v1282 = vand.u32 2147483647, %v1274
      %v1283 = vand.u32 2147483647, %v1275
      %v1284 = vand.u32 2147483647, %v1276
      %v1285 = vand.u32 2147483647, %v1277
      %v1286 = vand.u32 2147483647, %v1278
      %v1287 = vand.u32 2147483647, %v1279
      %v1288 = vadd.f32 %v1280, %v1281
      %v1289 = vadd.f32 %v1288, %v1282
      %v1290 = vadd.f32 %v1289, %v1283
      %v1291 = vadd.f32 %v1290, %v1284
      %v1292 = vadd.f32 %v1291, %v1285
      %v1293 = vadd.f32 %v1292, %v1286
      %v1294 = vadd.f32 %v1293, %v1287
      %v1295 = vmul.f32 %v1294, %v1294
      %v1296 = vsub.f32 %v1177, %v1198
      %v1297 = vand.u32 2147483647, %v1296
      %v1298 = vrot.slane %v1297, 4
      %v1299 = vadd.f32 %v1297, %v1298
      %v1300 = vrot.slane %v1299, 2
      %v1301 = vadd.f32 %v1299, %v1300
      %v1302 = vrot.slane %v1301, 1
      %v1303 = vadd.f32 %v1301, %v1302
      %v1304 = vmul.f32 %v1303, %v1303
      %v1305 = vadd.f32 %v1295, %v1304
      %vm1306 = vcmp.lt.f32.partialorder %v1181, 0.5
      %v1307 = vsel %vm1306, 1, 0
      %vm1308 = vcmp.eq.s32.totalorder %v1307, 1
      %v1309 = vsel %vm1308, %v1257, %v1169
      %v1310 = vsel %vm1308, %v1259, %v1170
      %v1311 = vsel %vm1308, %v1261, %v1171
      %v1312 = vsel %vm1308, %v1263, %v1172
      %v1313 = vsel %vm1308, %v1265, %v1173
      %v1314 = vsel %vm1308, %v1267, %v1174
      %v1315 = vsel %vm1308, %v1269, %v1175
      %v1316 = vsel %vm1308, %v1271, %v1176
      %v1317 = vsel %vm1308, %v1198, %v1177
      %vm1318 = vcmp.le.f32.partialorder %v1305, 0.001
      %v1319 = vsel %vm1318, 1, 0
      %v1320 = vcvt.s32.f32 %v1319
      %v1321 = vmax.f32 %v1181, %v1320
      %v1322 = vmul.f32 %v31, %v1309
      %v1323 = vmul.f32 %v32, %v1310
      %v1324 = vmul.f32 %v33, %v1311
      %v1325 = vmul.f32 %v34, %v1312
      %v1326 = vmul.f32 %v35, %v1313
      %v1327 = vmul.f32 %v36, %v1314
      %v1328 = vmul.f32 %v37, %v1315
      %v1329 = vmul.f32 %v38, %v1316
      %v1330 = vadd.f32 %v1322, %v1323
      %v1331 = vadd.f32 %v1330, %v1324
      %v1332 = vadd.f32 %v1331, %v1325
      %v1333 = vadd.f32 %v1332, %v1326
      %v1334 = vadd.f32 %v1333, %v1327
      %v1335 = vadd.f32 %v1334, %v1328
      %v1336 = vadd.f32 %v1335, %v1329
      %v1337 = vrcp.pop %v1336
      %v1338 = vmul.f32 %v42, %v1337
      %v1339 = vmul.f32 %v31, %v1338
      %v1340 = vmul.f32 %v32, %v1338
      %v1341 = vmul.f32 %v33, %v1338
      %v1342 = vmul.f32 %v34, %v1338
      %v1343 = vmul.f32 %v35, %v1338
      %v1344 = vmul.f32 %v36, %v1338
      %v1345 = vmul.f32 %v37, %v1338
      %v1346 = vmul.f32 %v38, %v1338
      %v1347 = vrot.slane %v1339, 4
      %v1348 = vadd.f32 %v1339, %v1347
      %v1349 = vrot.slane %v1348, 2
      %v1350 = vadd.f32 %v1348, %v1349
      %v1351 = vrot.slane %v1350, 1
      %v1352 = vadd.f32 %v1350, %v1351
      %v1353 = vrot.slane %v1340, 4
      %v1354 = vadd.f32 %v1340, %v1353
      %v1355 = vrot.slane %v1354, 2
      %v1356 = vadd.f32 %v1354, %v1355
      %v1357 = vrot.slane %v1356, 1
      %v1358 = vadd.f32 %v1356, %v1357
      %v1359 = vrot.slane %v1341, 4
      %v1360 = vadd.f32 %v1341, %v1359
      %v1361 = vrot.slane %v1360, 2
      %v1362 = vadd.f32 %v1360, %v1361
      %v1363 = vrot.slane %v1362, 1
      %v1364 = vadd.f32 %v1362, %v1363
      %v1365 = vrot.slane %v1342, 4
      %v1366 = vadd.f32 %v1342, %v1365
      %v1367 = vrot.slane %v1366, 2
      %v1368 = vadd.f32 %v1366, %v1367
      %v1369 = vrot.slane %v1368, 1
      %v1370 = vadd.f32 %v1368, %v1369
      %v1371 = vrot.slane %v1343, 4
      %v1372 = vadd.f32 %v1343, %v1371
      %v1373 = vrot.slane %v1372, 2
      %v1374 = vadd.f32 %v1372, %v1373
      %v1375 = vrot.slane %v1374, 1
      %v1376 = vadd.f32 %v1374, %v1375
      %v1377 = vrot.slane %v1344, 4
      %v1378 = vadd.f32 %v1344, %v1377
      %v1379 = vrot.slane %v1378, 2
      %v1380 = vadd.f32 %v1378, %v1379
      %v1381 = vrot.slane %v1380, 1
      %v1382 = vadd.f32 %v1380, %v1381
      %v1383 = vrot.slane %v1345, 4
      %v1384 = vadd.f32 %v1345, %v1383
      %v1385 = vrot.slane %v1384, 2
      %v1386 = vadd.f32 %v1384, %v1385
      %v1387 = vrot.slane %v1386, 1
      %v1388 = vadd.f32 %v1386, %v1387
      %v1389 = vrot.slane %v1346, 4
      %v1390 = vadd.f32 %v1346, %v1389
      %v1391 = vrot.slane %v1390, 2
      %v1392 = vadd.f32 %v1390, %v1391
      %v1393 = vrot.slane %v1392, 1
      %v1394 = vadd.f32 %v1392, %v1393
      %v1395 = vmul.f32 %v1394, 0.14285715
      %v1396 = vrcp.pop %v1352
      %v1397 = vmul.f32 1.0, %v1396
      %v1398 = vrcp.pop %v1358
      %v1399 = vmul.f32 1.0, %v1398
      %v1400 = vrcp.pop %v1364
      %v1401 = vmul.f32 1.0, %v1400
      %v1402 = vrcp.pop %v1370
      %v1403 = vmul.f32 1.0, %v1402
      %v1404 = vrcp.pop %v1376
      %v1405 = vmul.f32 1.0, %v1404
      %v1406 = vrcp.pop %v1382
      %v1407 = vmul.f32 1.0, %v1406
      %v1408 = vrcp.pop %v1388
      %v1409 = vmul.f32 1.0, %v1408
      %v1410 = vrcp.pop %v1395
      %v1411 = vmul.f32 1.0, %v1410
      %v1412 = vsub.f32 %v1309, %v1397
      %v1413 = vsub.f32 %v1310, %v1399
      %v1414 = vsub.f32 %v1311, %v1401
      %v1415 = vsub.f32 %v1312, %v1403
      %v1416 = vsub.f32 %v1313, %v1405
      %v1417 = vsub.f32 %v1314, %v1407
      %v1418 = vsub.f32 %v1315, %v1409
      %v1419 = vsub.f32 %v1316, %v1411
      %v1420 = vand.u32 2147483647, %v1412
      %v1421 = vand.u32 2147483647, %v1413
      %v1422 = vand.u32 2147483647, %v1414
      %v1423 = vand.u32 2147483647, %v1415
      %v1424 = vand.u32 2147483647, %v1416
      %v1425 = vand.u32 2147483647, %v1417
      %v1426 = vand.u32 2147483647, %v1418
      %v1427 = vand.u32 2147483647, %v1419
      %v1428 = vadd.f32 %v1420, %v1421
      %v1429 = vadd.f32 %v1428, %v1422
      %v1430 = vadd.f32 %v1429, %v1423
      %v1431 = vadd.f32 %v1430, %v1424
      %v1432 = vadd.f32 %v1431, %v1425
      %v1433 = vadd.f32 %v1432, %v1426
      %v1434 = vadd.f32 %v1433, %v1427
      %v1435 = vmul.f32 %v1434, %v1434
      %v1436 = vsub.f32 %v1317, %v1338
      %v1437 = vand.u32 2147483647, %v1436
      %v1438 = vrot.slane %v1437, 4
      %v1439 = vadd.f32 %v1437, %v1438
      %v1440 = vrot.slane %v1439, 2
      %v1441 = vadd.f32 %v1439, %v1440
      %v1442 = vrot.slane %v1441, 1
      %v1443 = vadd.f32 %v1441, %v1442
      %v1444 = vmul.f32 %v1443, %v1443
      %v1445 = vadd.f32 %v1435, %v1444
      %vm1446 = vcmp.lt.f32.partialorder %v1321, 0.5
      %v1447 = vsel %vm1446, 1, 0
      %vm1448 = vcmp.eq.s32.totalorder %v1447, 1
      %v1449 = vsel %vm1448, %v1397, %v1309
      %v1450 = vsel %vm1448, %v1399, %v1310
      %v1451 = vsel %vm1448, %v1401, %v1311
      %v1452 = vsel %vm1448, %v1403, %v1312
      %v1453 = vsel %vm1448, %v1405, %v1313
      %v1454 = vsel %vm1448, %v1407, %v1314
      %v1455 = vsel %vm1448, %v1409, %v1315
      %v1456 = vsel %vm1448, %v1411, %v1316
      %v1457 = vsel %vm1448, %v1338, %v1317
      %vm1458 = vcmp.le.f32.partialorder %v1445, 0.001
      %v1459 = vsel %vm1458, 1, 0
      %v1460 = vcvt.s32.f32 %v1459
      %v1461 = vmax.f32 %v1321, %v1460
      %s1462 = sadd.s32 %s44, 10
      %1463 = vmin.xlane.f32.xlu0 %v1461
      %v1464 = vpop.xlane.xlu0 %1463
      %s1465 = vtos %v1464
    $region14: #{tpu_custom_call.1} parent=1 // loop_footer
      _
    $region15: #{tpu_custom_call.1} parent=1 // loop_footer_branch
      %43 = sbr.rel target = $region11
    $region16: #{tpu_custom_call.1} parent=1 // loop_exit
      _
    %v1466 = vmul.f32 %v47, %v31
    %v1467 = vmul.f32 %v48, %v32
    %v1468 = vmul.f32 %v49, %v33
    %v1469 = vmul.f32 %v50, %v34
    %v1470 = vmul.f32 %v51, %v35
    %v1471 = vmul.f32 %v52, %v36
    %v1472 = vmul.f32 %v53, %v37
    %v1473 = vmul.f32 %v54, %v38
    %v1474 = vmul.f32 %v1466, %v55
    %v1475 = vmul.f32 %v1467, %v55
    %v1476 = vmul.f32 %v1468, %v55
    %v1477 = vmul.f32 %v1469, %v55
    %v1478 = vmul.f32 %v1470, %v55
    %v1479 = vmul.f32 %v1471, %v55
    %v1480 = vmul.f32 %v1472, %v55
    %v1481 = vmul.f32 %v1473, %v55
    %v1482 = vsel %vm41, 1, 0
    %vm1483 = vcmp.eq.s32.totalorder %v1482, 1
    %vm1484 = vmand 0, %vm1483
    %vm1485 = vmand 1, %vm1483
    %v1486 = vsel %vm1484, 0.0, %v1474
    %v1487 = vsel %vm1484, 0.0, %v1475
    %v1488 = vsel %vm1484, 0.0, %v1476
    %v1489 = vsel %vm1484, 0.0, %v1477
    %v1490 = vsel %vm1484, 0.0, %v1478
    %v1491 = vsel %vm1484, 0.0, %v1479
    %v1492 = vsel %vm1484, 0.0, %v1480
    %v1493 = vsel %vm1485, 0.0, %v1481
    %1494 = vst [vmem:[#allocation5] sm:$0xff] %v1486
    %1495 = vst [vmem:[#allocation5 + $0x8] sm:$0xff] %v1487
    %1496 = vst [vmem:[#allocation5 + $0x10] sm:$0xff] %v1488
    %1497 = vst [vmem:[#allocation5 + $0x18] sm:$0xff] %v1489
    %1498 = vst [vmem:[#allocation5 + $0x20] sm:$0xff] %v1490
    %1499 = vst [vmem:[#allocation5 + $0x28] sm:$0xff] %v1491
    %1500 = vst [vmem:[#allocation5 + $0x30] sm:$0xff] %v1492
    %1501 = vst [vmem:[#allocation5 + $0x38] sm:$0xff] %v1493
    // Predicated region
    $region17: #{tpu_custom_call.1} parent=1 // pred_check
      _
    $region18: #{tpu_custom_call.1} parent=1 // pred_check_branch
      %1503 = sbr.rel (0) target = $region20
    $region19: #{tpu_custom_call.1} parent=1 // pred_region
      %s1505 = ssub.s32 1024, 1024
      %1506 = vsyncadd [#allocation4], %s1505
      %s1507 = sshll.u32 [#allocation5], 4
      %s1508 = int_to_ptr.vmem [resolvable:$true] %s1507
      %1513 = dma.vmem_to_hbm [thread:$0]  %s1508, 1024, %s1, [#allocation4], 128, 128, 8
    $region20: #{tpu_custom_call.1} parent=1 // pred_fallthru
      _
    // Predicated region
    $region21: #{tpu_custom_call.1} parent=1 // pred_check
      _
    $region22: #{tpu_custom_call.1} parent=1 // pred_check_branch
      %1515 = sbr.rel (0) target = $region24
    $region23: #{tpu_custom_call.1} parent=1 // pred_region
      %1516 = dma.done [#allocation4], 1024
    $region24: #{tpu_custom_call.1} parent=1 // pred_fallthru
      _
    %1517 = vsyncpa [#allocation3], 1
    %1518 = vsyncpa [#allocation4], 1

</llo_original>
